<compile_context>
chip_gen: v6e
topology: v6e:2x2x1
jax: 0.10.0
libtpu: 0.0.40
codegen_flags: <defaults>
</compile_context>

<pallas_src>
import math
from functools import partial

import jax
import jax.numpy as jnp
from jax import lax
from jax.experimental import pallas as pl
from jax.experimental.pallas import tpu as pltpu


def _modconv_kernel(style_ref, modwT_ref, modb_ref, w_ref, patch_ref, out_ref,
                    *, kk, cout, mod_scale, conv_scale, demodulate, eps):
    # style_ref : (1, S, 1)      style row for this batch element (as a column)
    # modwT_ref : (S, Cin)       modulation weight, transposed
    # modb_ref  : (1, Cin)       modulation bias
    # w_ref     : (kk, Cout, Cin) conv weight, tap-major
    # patch_ref : (1, kk, Cin, HW_BLK) im2col patches for this (batch, spatial block)
    # out_ref   : (1, Cout, HW_BLK)
    hw_blk = out_ref.shape[-1]

    # --- modulation (EqualLinear, activation=None): s[ci] = sum_d style[d]*W[ci,d]*scale + bias[ci]
    style_col = style_ref[0].astype(jnp.float32)                      # (S, 1)
    prod = style_col * modwT_ref[...].astype(jnp.float32)             # (S, Cin)
    s_row = jnp.sum(prod, axis=0, keepdims=True) * mod_scale          # (1, Cin)
    s_row = s_row + modb_ref[...].astype(jnp.float32)                 # (1, Cin)

    acc = jnp.zeros((cout, hw_blk), dtype=jnp.float32)
    sq = jnp.zeros((cout, 1), dtype=jnp.float32)

    # --- conv as k*k MXU matmuls, modulation folded into the weight ---
    for t in range(kk):                                               # static unroll
        w_t = w_ref[t].astype(jnp.float32) * conv_scale * s_row       # (Cout, Cin)
        if demodulate:
            sq = sq + jnp.sum(w_t * w_t, axis=1, keepdims=True)       # (Cout, 1)
        p_t = patch_ref[0, t].astype(jnp.float32)                     # (Cin, HW_BLK)
        acc = acc + jnp.dot(w_t, p_t, preferred_element_type=jnp.float32)

    if demodulate:
        acc = acc * lax.rsqrt(sq + eps)                               # (Cout, HW_BLK)

    out_ref[0] = acc.astype(out_ref.dtype)


def modulated_conv2d(x, style, conv_weight, mod_weight, mod_bias, *,
                     demodulate=True, eps=1e-8):
    """x: (B,Cin,H,W); style: (B,S); conv_weight: (1,Cout,Cin,k,k);
    mod_weight: (Cin,S); mod_bias: (Cin,)."""
    B, Cin, H, W = x.shape
    assert conv_weight.ndim == 5 and conv_weight.shape[0] == 1
    _, Cout, Cin_w, kh, kw = conv_weight.shape
    assert Cin_w == Cin and kh == kw
    k = kh
    S = style.shape[-1]
    assert mod_weight.shape == (Cin, S)

    p = k // 2
    Ho = H + 2 * p - k + 1
    Wo = W + 2 * p - k + 1
    HWo = Ho * Wo
    kk = k * k

    mod_scale = 1.0 / math.sqrt(S)
    conv_scale = 1.0 / math.sqrt(Cin * k * k)

    # ---- wrapper-side layout plumbing (metadata / cheap vs conv FLOPs) ----
    x_pad = jnp.pad(x, ((0, 0), (0, 0), (p, p), (p, p)))
    # tap-major im2col: patches[b, ky*k+kx, ci, y*Wo + x] = x_pad[b, ci, y+ky, x+kx]
    patches = jnp.stack(
        [x_pad[:, :, ky:ky + Ho, kx:kx + Wo] for ky in range(k) for kx in range(k)],
        axis=1,
    ).reshape(B, kk, Cin, HWo)

    w_taps = jnp.transpose(conv_weight[0], (2, 3, 0, 1)).reshape(kk, Cout, Cin)
    modwT = jnp.transpose(mod_weight)              # (S, Cin)
    modb = mod_bias.reshape(1, Cin)
    style_col = style.reshape(B, S, 1)

    # ---- spatial block size: lane-dense (multiple of 128), sized for VMEM ----
    itemsize = jnp.dtype(x.dtype).itemsize
    bytes_per_col = 2 * (kk * Cin + Cout) * itemsize    # double-buffered patch + out blocks
    budget = 20 * 1024 * 1024                           # stay under default 32 MiB scoped VMEM
    hw_blk = max(128, (budget // bytes_per_col) // 128 * 128)
    if hw_blk >= HWo:
        hw_blk = HWo
    n_hw = pl.cdiv(HWo, hw_blk)

    kernel = partial(_modconv_kernel, kk=kk, cout=Cout,
                     mod_scale=mod_scale, conv_scale=conv_scale,
                     demodulate=demodulate, eps=eps)

    out = pl.pallas_call(
        kernel,
        out_shape=jax.ShapeDtypeStruct((B, Cout, HWo), x.dtype),
        grid_spec=pl.GridSpec(
            grid=(B, n_hw),
            in_specs=[
                pl.BlockSpec((1, S, 1), lambda b, j: (b, 0, 0)),            # style (per batch)
                pl.BlockSpec((S, Cin), lambda b, j: (0, 0)),                # modulation weight^T
                pl.BlockSpec((1, Cin), lambda b, j: (0, 0)),                # modulation bias
                pl.BlockSpec((kk, Cout, Cin), lambda b, j: (0, 0, 0)),      # conv weight (tap-major)
                pl.BlockSpec((1, kk, Cin, hw_blk), lambda b, j: (b, 0, 0, j)),  # im2col patches
            ],
            out_specs=pl.BlockSpec((1, Cout, hw_blk), lambda b, j: (b, 0, j)),
        ),
        compiler_params=pltpu.CompilerParams(
            dimension_semantics=("parallel", "parallel"),
        ),
    )(style_col, modwT, modb, w_taps, patches)

    return out.reshape(B, Cout, Ho, Wo)


def _reference_modulated_conv2d(x, style, conv_weight, mod_weight, mod_bias, *,
                                demodulate=True, eps=1e-8):
    """Pure-JAX mirror of the PyTorch non-fused, stride-1 forward."""
    B, Cin, H, W = x.shape
    _, Cout, _, k, _ = conv_weight.shape
    S = style.shape[-1]
    mod_scale = 1.0 / math.sqrt(S)
    conv_scale = 1.0 / math.sqrt(Cin * k * k)

    s = style @ (mod_weight * mod_scale).T + mod_bias          # (B, Cin)
    w = conv_scale * conv_weight[0]                            # (Cout, Cin, k, k)
    if demodulate:
        wmod = w[None, ...] * s[:, None, :, None, None]
        dcoefs = lax.rsqrt(jnp.sum(wmod * wmod, axis=(2, 3, 4)) + eps)  # (B, Cout)
    xm = x * s[:, :, None, None]
    out = lax.conv_general_dilated(
        xm, w, window_strides=(1, 1),
        padding=[(k // 2, k // 2), (k // 2, k // 2)],
        dimension_numbers=("NCHW", "OIHW", "NCHW"))
    if demodulate:
        out = out * dcoefs[:, :, None, None]
    return out


if __name__ == "__main__":
    key = jax.random.PRNGKey(0)
    k_x, k_style, k_w, k_mod = jax.random.split(key, 4)

    B, Cin, Cout, H, W = 2, 4, 8, 16, 16
    ksize, style_dim = 3, 32

    x = jax.random.normal(k_x, (B, Cin, H, W), dtype=jnp.float32)
    style = jax.random.normal(k_style, (B, style_dim), dtype=jnp.float32)
    conv_weight = jax.random.normal(k_w, (1, Cout, Cin, ksize, ksize), dtype=jnp.float32)
    mod_weight = jax.random.normal(k_mod, (Cin, style_dim), dtype=jnp.float32)   # lr_mul = 1
    mod_bias = jnp.ones((Cin,), dtype=jnp.float32)                               # bias_init = 1

    # demodulate=True (module default)
    out = modulated_conv2d(x, style, conv_weight, mod_weight, mod_bias, demodulate=True)
    out = jax.block_until_ready(out)
    assert out.shape == (B, Cout, H, W)
    ref = _reference_modulated_conv2d(x, style, conv_weight, mod_weight, mod_bias,
                                      demodulate=True)
    assert jnp.allclose(out, ref, atol=1e-3, rtol=1e-3), "mismatch vs reference (demodulate=True)"

    # demodulate=False path
    out2 = jax.block_until_ready(
        modulated_conv2d(x, style, conv_weight, mod_weight, mod_bias, demodulate=False))
    ref2 = _reference_modulated_conv2d(x, style, conv_weight, mod_weight, mod_bias,
                                       demodulate=False)
    assert jnp.allclose(out2, ref2, atol=1e-3, rtol=1e-3), "mismatch vs reference (demodulate=False)"

    print("KERNEL_OK")
</pallas_src>

<mosaic_0001>
module attributes {stable_mosaic.version = 11 : i64} {
  func.func @_modconv_kernel(%arg0: i32, %arg1: i32, %arg2: memref<1x32x1xf32, #tpu.memory_space<vmem>>, %arg3: memref<32x4xf32, #tpu.memory_space<vmem>>, %arg4: memref<1x4xf32, #tpu.memory_space<vmem>>, %arg5: memref<9x8x4xf32, #tpu.memory_space<vmem>>, %arg6: memref<1x9x4x256xf32, #tpu.memory_space<vmem>>, %arg7: memref<1x8x256xf32, #tpu.memory_space<vmem>>) attributes {dimension_semantics = [#tpu.dimension_semantics<parallel>, #tpu.dimension_semantics<parallel>], iteration_bounds = array<i64: 2, 1>, scalar_prefetch = 0 : i64, scratch_operands = 0 : i64, tpu.core_type = #tpu.core_type<tc>, window_params = [{transform_indices = @transform_0, window_bounds = array<i64: 1, 32, 1>}, {pipeline_mode = #tpu.pipeline_mode<synchronous>, transform_indices = @transform_1, window_bounds = array<i64: 32, 4>}, {pipeline_mode = #tpu.pipeline_mode<synchronous>, transform_indices = @transform_2, window_bounds = array<i64: 1, 4>}, {pipeline_mode = #tpu.pipeline_mode<synchronous>, transform_indices = @transform_3, window_bounds = array<i64: 9, 8, 4>}, {transform_indices = @transform_4, window_bounds = array<i64: 1, 9, 4, 256>}, {transform_indices = @transform_5, window_bounds = array<i64: 1, 8, 256>}]} {
    %c0 = arith.constant 0 : index
    %c0_0 = arith.constant 0 : index
    %c0_1 = arith.constant 0 : index
    %0 = vector.load %arg2[%c0, %c0_0, %c0_1] : memref<1x32x1xf32, #tpu.memory_space<vmem>>, vector<1x32x1xf32>
    %1 = vector.shape_cast %0 : vector<1x32x1xf32> to vector<32x1xf32>
    %c0_2 = arith.constant 0 : index
    %c0_3 = arith.constant 0 : index
    %2 = vector.load %arg3[%c0_2, %c0_3] : memref<32x4xf32, #tpu.memory_space<vmem>>, vector<32x4xf32>
    %3 = vector.broadcast %1 : vector<32x1xf32> to vector<32x4xf32>
    %4 = arith.mulf %3, %2 : vector<32x4xf32>
    %cst = arith.constant dense<0.000000e+00> : vector<4xf32>
    %5 = vector.multi_reduction <add>, %4, %cst [0] : vector<32x4xf32> to vector<4xf32>
    %6 = vector.shape_cast %5 : vector<4xf32> to vector<1x4xf32>
    %cst_4 = arith.constant 0.176776692 : f32
    %7 = vector.broadcast %cst_4 : f32 to vector<1x4xf32>
    %8 = arith.mulf %6, %7 : vector<1x4xf32>
    %c0_5 = arith.constant 0 : index
    %c0_6 = arith.constant 0 : index
    %9 = vector.load %arg4[%c0_5, %c0_6] : memref<1x4xf32, #tpu.memory_space<vmem>>, vector<1x4xf32>
    %10 = arith.addf %8, %9 : vector<1x4xf32>
    %cst_7 = arith.constant 0.000000e+00 : f32
    %11 = vector.broadcast %cst_7 : f32 to vector<8x256xf32>
    %cst_8 = arith.constant 0.000000e+00 : f32
    %12 = vector.broadcast %cst_8 : f32 to vector<8x1xf32>
    %c0_9 = arith.constant 0 : index
    %c0_10 = arith.constant 0 : index
    %c0_11 = arith.constant 0 : index
    %13 = vector.load %arg5[%c0_9, %c0_10, %c0_11] : memref<9x8x4xf32, #tpu.memory_space<vmem>>, vector<1x8x4xf32>
    %14 = vector.shape_cast %13 : vector<1x8x4xf32> to vector<8x4xf32>
    %cst_12 = arith.constant 0.166666672 : f32
    %15 = vector.broadcast %cst_12 : f32 to vector<8x4xf32>
    %16 = arith.mulf %14, %15 : vector<8x4xf32>
    %17 = vector.broadcast %10 : vector<1x4xf32> to vector<8x4xf32>
    %18 = arith.mulf %16, %17 : vector<8x4xf32>
    %19 = arith.mulf %18, %18 : vector<8x4xf32>
    %cst_13 = arith.constant dense<0.000000e+00> : vector<8xf32>
    %20 = vector.multi_reduction <add>, %19, %cst_13 [1] : vector<8x4xf32> to vector<8xf32>
    %21 = vector.shape_cast %20 : vector<8xf32> to vector<8x1xf32>
    %22 = arith.addf %12, %21 : vector<8x1xf32>
    %c0_14 = arith.constant 0 : index
    %c0_15 = arith.constant 0 : index
    %c0_16 = arith.constant 0 : index
    %c0_17 = arith.constant 0 : index
    %23 = vector.load %arg6[%c0_14, %c0_15, %c0_16, %c0_17] : memref<1x9x4x256xf32, #tpu.memory_space<vmem>>, vector<1x1x4x256xf32>
    %24 = vector.shape_cast %23 : vector<1x1x4x256xf32> to vector<4x256xf32>
    %cst_18 = arith.constant dense<0.000000e+00> : vector<8x256xf32>
    %25 = tpu.matmul %18, %24, %cst_18 {dimension_numbers = #tpu.dot_dimension_numbers<[1], [0], [0], [1], [0, 0, 1, 1], [], []>} : vector<8x4xf32>, vector<4x256xf32>, vector<8x256xf32> -> vector<8x256xf32>
    %26 = arith.addf %11, %25 : vector<8x256xf32>
    %c1 = arith.constant 1 : index
    %c0_19 = arith.constant 0 : index
    %c0_20 = arith.constant 0 : index
    %27 = vector.load %arg5[%c1, %c0_19, %c0_20] : memref<9x8x4xf32, #tpu.memory_space<vmem>>, vector<1x8x4xf32>
    %28 = vector.shape_cast %27 : vector<1x8x4xf32> to vector<8x4xf32>
    %cst_21 = arith.constant 0.166666672 : f32
    %29 = vector.broadcast %cst_21 : f32 to vector<8x4xf32>
    %30 = arith.mulf %28, %29 : vector<8x4xf32>
    %31 = vector.broadcast %10 : vector<1x4xf32> to vector<8x4xf32>
    %32 = arith.mulf %30, %31 : vector<8x4xf32>
    %33 = arith.mulf %32, %32 : vector<8x4xf32>
    %cst_22 = arith.constant dense<0.000000e+00> : vector<8xf32>
    %34 = vector.multi_reduction <add>, %33, %cst_22 [1] : vector<8x4xf32> to vector<8xf32>
    %35 = vector.shape_cast %34 : vector<8xf32> to vector<8x1xf32>
    %36 = arith.addf %22, %35 : vector<8x1xf32>
    %c0_23 = arith.constant 0 : index
    %c1_24 = arith.constant 1 : index
    %c0_25 = arith.constant 0 : index
    %c0_26 = arith.constant 0 : index
    %37 = vector.load %arg6[%c0_23, %c1_24, %c0_25, %c0_26] : memref<1x9x4x256xf32, #tpu.memory_space<vmem>>, vector<1x1x4x256xf32>
    %38 = vector.shape_cast %37 : vector<1x1x4x256xf32> to vector<4x256xf32>
    %cst_27 = arith.constant dense<0.000000e+00> : vector<8x256xf32>
    %39 = tpu.matmul %32, %38, %cst_27 {dimension_numbers = #tpu.dot_dimension_numbers<[1], [0], [0], [1], [0, 0, 1, 1], [], []>} : vector<8x4xf32>, vector<4x256xf32>, vector<8x256xf32> -> vector<8x256xf32>
    %40 = arith.addf %26, %39 : vector<8x256xf32>
    %c2 = arith.constant 2 : index
    %c0_28 = arith.constant 0 : index
    %c0_29 = arith.constant 0 : index
    %41 = vector.load %arg5[%c2, %c0_28, %c0_29] : memref<9x8x4xf32, #tpu.memory_space<vmem>>, vector<1x8x4xf32>
    %42 = vector.shape_cast %41 : vector<1x8x4xf32> to vector<8x4xf32>
    %cst_30 = arith.constant 0.166666672 : f32
    %43 = vector.broadcast %cst_30 : f32 to vector<8x4xf32>
    %44 = arith.mulf %42, %43 : vector<8x4xf32>
    %45 = vector.broadcast %10 : vector<1x4xf32> to vector<8x4xf32>
    %46 = arith.mulf %44, %45 : vector<8x4xf32>
    %47 = arith.mulf %46, %46 : vector<8x4xf32>
    %cst_31 = arith.constant dense<0.000000e+00> : vector<8xf32>
    %48 = vector.multi_reduction <add>, %47, %cst_31 [1] : vector<8x4xf32> to vector<8xf32>
    %49 = vector.shape_cast %48 : vector<8xf32> to vector<8x1xf32>
    %50 = arith.addf %36, %49 : vector<8x1xf32>
    %c0_32 = arith.constant 0 : index
    %c2_33 = arith.constant 2 : index
    %c0_34 = arith.constant 0 : index
    %c0_35 = arith.constant 0 : index
    %51 = vector.load %arg6[%c0_32, %c2_33, %c0_34, %c0_35] : memref<1x9x4x256xf32, #tpu.memory_space<vmem>>, vector<1x1x4x256xf32>
    %52 = vector.shape_cast %51 : vector<1x1x4x256xf32> to vector<4x256xf32>
    %cst_36 = arith.constant dense<0.000000e+00> : vector<8x256xf32>
    %53 = tpu.matmul %46, %52, %cst_36 {dimension_numbers = #tpu.dot_dimension_numbers<[1], [0], [0], [1], [0, 0, 1, 1], [], []>} : vector<8x4xf32>, vector<4x256xf32>, vector<8x256xf32> -> vector<8x256xf32>
    %54 = arith.addf %40, %53 : vector<8x256xf32>
    %c3 = arith.constant 3 : index
    %c0_37 = arith.constant 0 : index
    %c0_38 = arith.constant 0 : index
    %55 = vector.load %arg5[%c3, %c0_37, %c0_38] : memref<9x8x4xf32, #tpu.memory_space<vmem>>, vector<1x8x4xf32>
    %56 = vector.shape_cast %55 : vector<1x8x4xf32> to vector<8x4xf32>
    %cst_39 = arith.constant 0.166666672 : f32
    %57 = vector.broadcast %cst_39 : f32 to vector<8x4xf32>
    %58 = arith.mulf %56, %57 : vector<8x4xf32>
    %59 = vector.broadcast %10 : vector<1x4xf32> to vector<8x4xf32>
    %60 = arith.mulf %58, %59 : vector<8x4xf32>
    %61 = arith.mulf %60, %60 : vector<8x4xf32>
    %cst_40 = arith.constant dense<0.000000e+00> : vector<8xf32>
    %62 = vector.multi_reduction <add>, %61, %cst_40 [1] : vector<8x4xf32> to vector<8xf32>
    %63 = vector.shape_cast %62 : vector<8xf32> to vector<8x1xf32>
    %64 = arith.addf %50, %63 : vector<8x1xf32>
    %c0_41 = arith.constant 0 : index
    %c3_42 = arith.constant 3 : index
    %c0_43 = arith.constant 0 : index
    %c0_44 = arith.constant 0 : index
    %65 = vector.load %arg6[%c0_41, %c3_42, %c0_43, %c0_44] : memref<1x9x4x256xf32, #tpu.memory_space<vmem>>, vector<1x1x4x256xf32>
    %66 = vector.shape_cast %65 : vector<1x1x4x256xf32> to vector<4x256xf32>
    %cst_45 = arith.constant dense<0.000000e+00> : vector<8x256xf32>
    %67 = tpu.matmul %60, %66, %cst_45 {dimension_numbers = #tpu.dot_dimension_numbers<[1], [0], [0], [1], [0, 0, 1, 1], [], []>} : vector<8x4xf32>, vector<4x256xf32>, vector<8x256xf32> -> vector<8x256xf32>
    %68 = arith.addf %54, %67 : vector<8x256xf32>
    %c4 = arith.constant 4 : index
    %c0_46 = arith.constant 0 : index
    %c0_47 = arith.constant 0 : index
    %69 = vector.load %arg5[%c4, %c0_46, %c0_47] : memref<9x8x4xf32, #tpu.memory_space<vmem>>, vector<1x8x4xf32>
    %70 = vector.shape_cast %69 : vector<1x8x4xf32> to vector<8x4xf32>
    %cst_48 = arith.constant 0.166666672 : f32
    %71 = vector.broadcast %cst_48 : f32 to vector<8x4xf32>
    %72 = arith.mulf %70, %71 : vector<8x4xf32>
    %73 = vector.broadcast %10 : vector<1x4xf32> to vector<8x4xf32>
    %74 = arith.mulf %72, %73 : vector<8x4xf32>
    %75 = arith.mulf %74, %74 : vector<8x4xf32>
    %cst_49 = arith.constant dense<0.000000e+00> : vector<8xf32>
    %76 = vector.multi_reduction <add>, %75, %cst_49 [1] : vector<8x4xf32> to vector<8xf32>
    %77 = vector.shape_cast %76 : vector<8xf32> to vector<8x1xf32>
    %78 = arith.addf %64, %77 : vector<8x1xf32>
    %c0_50 = arith.constant 0 : index
    %c4_51 = arith.constant 4 : index
    %c0_52 = arith.constant 0 : index
    %c0_53 = arith.constant 0 : index
    %79 = vector.load %arg6[%c0_50, %c4_51, %c0_52, %c0_53] : memref<1x9x4x256xf32, #tpu.memory_space<vmem>>, vector<1x1x4x256xf32>
    %80 = vector.shape_cast %79 : vector<1x1x4x256xf32> to vector<4x256xf32>
    %cst_54 = arith.constant dense<0.000000e+00> : vector<8x256xf32>
    %81 = tpu.matmul %74, %80, %cst_54 {dimension_numbers = #tpu.dot_dimension_numbers<[1], [0], [0], [1], [0, 0, 1, 1], [], []>} : vector<8x4xf32>, vector<4x256xf32>, vector<8x256xf32> -> vector<8x256xf32>
    %82 = arith.addf %68, %81 : vector<8x256xf32>
    %c5 = arith.constant 5 : index
    %c0_55 = arith.constant 0 : index
    %c0_56 = arith.constant 0 : index
    %83 = vector.load %arg5[%c5, %c0_55, %c0_56] : memref<9x8x4xf32, #tpu.memory_space<vmem>>, vector<1x8x4xf32>
    %84 = vector.shape_cast %83 : vector<1x8x4xf32> to vector<8x4xf32>
    %cst_57 = arith.constant 0.166666672 : f32
    %85 = vector.broadcast %cst_57 : f32 to vector<8x4xf32>
    %86 = arith.mulf %84, %85 : vector<8x4xf32>
    %87 = vector.broadcast %10 : vector<1x4xf32> to vector<8x4xf32>
    %88 = arith.mulf %86, %87 : vector<8x4xf32>
    %89 = arith.mulf %88, %88 : vector<8x4xf32>
    %cst_58 = arith.constant dense<0.000000e+00> : vector<8xf32>
    %90 = vector.multi_reduction <add>, %89, %cst_58 [1] : vector<8x4xf32> to vector<8xf32>
    %91 = vector.shape_cast %90 : vector<8xf32> to vector<8x1xf32>
    %92 = arith.addf %78, %91 : vector<8x1xf32>
    %c0_59 = arith.constant 0 : index
    %c5_60 = arith.constant 5 : index
    %c0_61 = arith.constant 0 : index
    %c0_62 = arith.constant 0 : index
    %93 = vector.load %arg6[%c0_59, %c5_60, %c0_61, %c0_62] : memref<1x9x4x256xf32, #tpu.memory_space<vmem>>, vector<1x1x4x256xf32>
    %94 = vector.shape_cast %93 : vector<1x1x4x256xf32> to vector<4x256xf32>
    %cst_63 = arith.constant dense<0.000000e+00> : vector<8x256xf32>
    %95 = tpu.matmul %88, %94, %cst_63 {dimension_numbers = #tpu.dot_dimension_numbers<[1], [0], [0], [1], [0, 0, 1, 1], [], []>} : vector<8x4xf32>, vector<4x256xf32>, vector<8x256xf32> -> vector<8x256xf32>
    %96 = arith.addf %82, %95 : vector<8x256xf32>
    %c6 = arith.constant 6 : index
    %c0_64 = arith.constant 0 : index
    %c0_65 = arith.constant 0 : index
    %97 = vector.load %arg5[%c6, %c0_64, %c0_65] : memref<9x8x4xf32, #tpu.memory_space<vmem>>, vector<1x8x4xf32>
    %98 = vector.shape_cast %97 : vector<1x8x4xf32> to vector<8x4xf32>
    %cst_66 = arith.constant 0.166666672 : f32
    %99 = vector.broadcast %cst_66 : f32 to vector<8x4xf32>
    %100 = arith.mulf %98, %99 : vector<8x4xf32>
    %101 = vector.broadcast %10 : vector<1x4xf32> to vector<8x4xf32>
    %102 = arith.mulf %100, %101 : vector<8x4xf32>
    %103 = arith.mulf %102, %102 : vector<8x4xf32>
    %cst_67 = arith.constant dense<0.000000e+00> : vector<8xf32>
    %104 = vector.multi_reduction <add>, %103, %cst_67 [1] : vector<8x4xf32> to vector<8xf32>
    %105 = vector.shape_cast %104 : vector<8xf32> to vector<8x1xf32>
    %106 = arith.addf %92, %105 : vector<8x1xf32>
    %c0_68 = arith.constant 0 : index
    %c6_69 = arith.constant 6 : index
    %c0_70 = arith.constant 0 : index
    %c0_71 = arith.constant 0 : index
    %107 = vector.load %arg6[%c0_68, %c6_69, %c0_70, %c0_71] : memref<1x9x4x256xf32, #tpu.memory_space<vmem>>, vector<1x1x4x256xf32>
    %108 = vector.shape_cast %107 : vector<1x1x4x256xf32> to vector<4x256xf32>
    %cst_72 = arith.constant dense<0.000000e+00> : vector<8x256xf32>
    %109 = tpu.matmul %102, %108, %cst_72 {dimension_numbers = #tpu.dot_dimension_numbers<[1], [0], [0], [1], [0, 0, 1, 1], [], []>} : vector<8x4xf32>, vector<4x256xf32>, vector<8x256xf32> -> vector<8x256xf32>
    %110 = arith.addf %96, %109 : vector<8x256xf32>
    %c7 = arith.constant 7 : index
    %c0_73 = arith.constant 0 : index
    %c0_74 = arith.constant 0 : index
    %111 = vector.load %arg5[%c7, %c0_73, %c0_74] : memref<9x8x4xf32, #tpu.memory_space<vmem>>, vector<1x8x4xf32>
    %112 = vector.shape_cast %111 : vector<1x8x4xf32> to vector<8x4xf32>
    %cst_75 = arith.constant 0.166666672 : f32
    %113 = vector.broadcast %cst_75 : f32 to vector<8x4xf32>
    %114 = arith.mulf %112, %113 : vector<8x4xf32>
    %115 = vector.broadcast %10 : vector<1x4xf32> to vector<8x4xf32>
    %116 = arith.mulf %114, %115 : vector<8x4xf32>
    %117 = arith.mulf %116, %116 : vector<8x4xf32>
    %cst_76 = arith.constant dense<0.000000e+00> : vector<8xf32>
    %118 = vector.multi_reduction <add>, %117, %cst_76 [1] : vector<8x4xf32> to vector<8xf32>
    %119 = vector.shape_cast %118 : vector<8xf32> to vector<8x1xf32>
    %120 = arith.addf %106, %119 : vector<8x1xf32>
    %c0_77 = arith.constant 0 : index
    %c7_78 = arith.constant 7 : index
    %c0_79 = arith.constant 0 : index
    %c0_80 = arith.constant 0 : index
    %121 = vector.load %arg6[%c0_77, %c7_78, %c0_79, %c0_80] : memref<1x9x4x256xf32, #tpu.memory_space<vmem>>, vector<1x1x4x256xf32>
    %122 = vector.shape_cast %121 : vector<1x1x4x256xf32> to vector<4x256xf32>
    %cst_81 = arith.constant dense<0.000000e+00> : vector<8x256xf32>
    %123 = tpu.matmul %116, %122, %cst_81 {dimension_numbers = #tpu.dot_dimension_numbers<[1], [0], [0], [1], [0, 0, 1, 1], [], []>} : vector<8x4xf32>, vector<4x256xf32>, vector<8x256xf32> -> vector<8x256xf32>
    %124 = arith.addf %110, %123 : vector<8x256xf32>
    %c8 = arith.constant 8 : index
    %c0_82 = arith.constant 0 : index
    %c0_83 = arith.constant 0 : index
    %125 = vector.load %arg5[%c8, %c0_82, %c0_83] : memref<9x8x4xf32, #tpu.memory_space<vmem>>, vector<1x8x4xf32>
    %126 = vector.shape_cast %125 : vector<1x8x4xf32> to vector<8x4xf32>
    %cst_84 = arith.constant 0.166666672 : f32
    %127 = vector.broadcast %cst_84 : f32 to vector<8x4xf32>
    %128 = arith.mulf %126, %127 : vector<8x4xf32>
    %129 = vector.broadcast %10 : vector<1x4xf32> to vector<8x4xf32>
    %130 = arith.mulf %128, %129 : vector<8x4xf32>
    %131 = arith.mulf %130, %130 : vector<8x4xf32>
    %cst_85 = arith.constant dense<0.000000e+00> : vector<8xf32>
    %132 = vector.multi_reduction <add>, %131, %cst_85 [1] : vector<8x4xf32> to vector<8xf32>
    %133 = vector.shape_cast %132 : vector<8xf32> to vector<8x1xf32>
    %134 = arith.addf %120, %133 : vector<8x1xf32>
    %c0_86 = arith.constant 0 : index
    %c8_87 = arith.constant 8 : index
    %c0_88 = arith.constant 0 : index
    %c0_89 = arith.constant 0 : index
    %135 = vector.load %arg6[%c0_86, %c8_87, %c0_88, %c0_89] : memref<1x9x4x256xf32, #tpu.memory_space<vmem>>, vector<1x1x4x256xf32>
    %136 = vector.shape_cast %135 : vector<1x1x4x256xf32> to vector<4x256xf32>
    %cst_90 = arith.constant dense<0.000000e+00> : vector<8x256xf32>
    %137 = tpu.matmul %130, %136, %cst_90 {dimension_numbers = #tpu.dot_dimension_numbers<[1], [0], [0], [1], [0, 0, 1, 1], [], []>} : vector<8x4xf32>, vector<4x256xf32>, vector<8x256xf32> -> vector<8x256xf32>
    %138 = arith.addf %124, %137 : vector<8x256xf32>
    %cst_91 = arith.constant 9.99999993E-9 : f32
    %139 = vector.broadcast %cst_91 : f32 to vector<8x1xf32>
    %140 = arith.addf %134, %139 : vector<8x1xf32>
    %141 = math.rsqrt %140 : vector<8x1xf32>
    %142 = vector.broadcast %141 : vector<8x1xf32> to vector<8x256xf32>
    %143 = arith.mulf %138, %142 : vector<8x256xf32>
    %c0_92 = arith.constant 0 : index
    %c0_93 = arith.constant 0 : index
    %c0_94 = arith.constant 0 : index
    %144 = vector.load %arg7[%c0_92, %c0_93, %c0_94] : memref<1x8x256xf32, #tpu.memory_space<vmem>>, vector<1x8x256xf32>
    %145 = vector.shape_cast %144 : vector<1x8x256xf32> to vector<8x256xf32>
    %146 = vector.shape_cast %143 : vector<8x256xf32> to vector<1x8x256xf32>
    tpu.vector_store %arg7[%c0_92, %c0_93, %c0_94], %146 {strides = array<i32>} : memref<1x8x256xf32, #tpu.memory_space<vmem>>, vector<1x8x256xf32>,
    return
  }
  func.func @transform_0(%arg0: i32, %arg1: i32) -> (i32, i32, i32) {
    %c0_i32 = arith.constant 0 : i32
    %c0_i32_0 = arith.constant 0 : i32
    %c0_i32_1 = arith.constant 0 : i32
    return %arg0, %c0_i32, %c0_i32_0 : i32, i32, i32
  }
  func.func @transform_1(%arg0: i32, %arg1: i32) -> (i32, i32) {
    %c0_i32 = arith.constant 0 : i32
    %c0_i32_0 = arith.constant 0 : i32
    %c0_i32_1 = arith.constant 0 : i32
    return %c0_i32, %c0_i32_0 : i32, i32
  }
  func.func @transform_2(%arg0: i32, %arg1: i32) -> (i32, i32) {
    %c0_i32 = arith.constant 0 : i32
    %c0_i32_0 = arith.constant 0 : i32
    %c0_i32_1 = arith.constant 0 : i32
    return %c0_i32, %c0_i32_0 : i32, i32
  }
  func.func @transform_3(%arg0: i32, %arg1: i32) -> (i32, i32, i32) {
    %c0_i32 = arith.constant 0 : i32
    %c0_i32_0 = arith.constant 0 : i32
    %c0_i32_1 = arith.constant 0 : i32
    %c0_i32_2 = arith.constant 0 : i32
    return %c0_i32, %c0_i32_0, %c0_i32_1 : i32, i32, i32
  }
  func.func @transform_4(%arg0: i32, %arg1: i32) -> (i32, i32, i32, i32) {
    %c0_i32 = arith.constant 0 : i32
    %c0_i32_0 = arith.constant 0 : i32
    %c0_i32_1 = arith.constant 0 : i32
    return %arg0, %c0_i32, %c0_i32_0, %arg1 : i32, i32, i32, i32
  }
  func.func @transform_5(%arg0: i32, %arg1: i32) -> (i32, i32, i32) {
    %c0_i32 = arith.constant 0 : i32
    %c0_i32_0 = arith.constant 0 : i32
    return %arg0, %c0_i32, %arg1 : i32, i32, i32
  }
}

</mosaic_0001>

<llo_original>
// kernel: tpu_custom_call.1
$region0: #{tpu_custom_call.1}
  #allocation0 [shape = 'u32[]', space=smem, size = 0x4, offset = 0x4, fixed_abs, tag = 'smem constant byte address 0x4 - core index']
  #allocation1 [shape = 'u32[144,128]{1,0:T(1,128)}', space=vmem, size = 0x12000, scoped, tag = 'internal scratch']
  %s0 = inlined_call_operand.vmem [shape: f32[2,32,1], index: 0, kind: input, shape index: {}]
  %s1 = inlined_call_operand.vmem [shape: f32[32,4], index: 1, kind: input, shape index: {}]
  %s2 = inlined_call_operand.vmem [shape: f32[1,4], index: 2, kind: input, shape index: {}]
  %s3 = inlined_call_operand.vmem [shape: f32[9,8,4], index: 3, kind: input, shape index: {}]
  %s4 = inlined_call_operand.vmem [shape: f32[2,9,4,256], index: 4, kind: input, shape index: {}]
  %s5 = inlined_call_operand.hbm [shape: f32[2,8,256], index: 5, kind: output, shape index: {}]
  %s6 = sld [smem:[#allocation0]]
  $region53: #{tpu_custom_call.1} parent=0
    _
  %s8 = ssub.s32 1, %s6
  %s9 = scalar_select 0, %s8, %s6
  $region1: #{tpu_custom_call.1} parent=0
    #allocation2 [shape = 'u8[16384]{0}', space=vmem, size = 0x4000, scoped, tag = 'output window, operand 0']
    #allocation3 [shape = 's32[2]{0}', space=sflag, size = 0x8, scoped, tag = 'scoped memory for tpu_custom_call.1']
    %10 = vsyncpa [#allocation3], 0
    %s11 = scalar_lea.sflag [#allocation3], 1
    %12 = vsyncpa %s11, 0
    loop: start=0, step=1, limit=4
    $region2: #{tpu_custom_call.1} parent=1 // loop_pre_header
      _
    $region3: #{tpu_custom_call.1} parent=1 // loop_header
      %s14 = sphi 0, %s18
      %p15 = scmp.ge.s32.totalorder %s14, 4
      %s21 = sphi 0, %s33
      %s22 = sphi 0, %s29
      %s23 = sphi 0, %s21
      %s24 = sphi 0, %s22
      %s25 = sphi 0, %s23
      %s26 = sphi 0, %s24
      %s36 = sphi 0, %s38
      %s39 = sphi 0, %s36
      %s40 = sphi 0, %s39
      %s56 = sphi 0, %s40
      %s60 = sphi 0, %s60
      %s62 = sphi 0, %s60
      %s63 = sphi 0, %s62
      %s77 = sphi 0, %s63
      %s81 = sphi 0, %s81
      %s83 = sphi 0, %s81
      %s84 = sphi 0, %s83
      %s98 = sphi 0, %s84
      %s102 = sphi 0, %s102
      %s104 = sphi 0, %s102
      %s105 = sphi 0, %s104
      %s119 = sphi 0, %s105
      %s127 = sphi 0, %s129
      %s130 = sphi 0, %s127
      %s131 = sphi 0, %s130
      %s147 = sphi 0, %s131
      %s155 = sphi 0, %s157
      %s158 = sphi 0, %s155
      %s159 = sphi 0, %s158
      %s175 = sphi 0, %s159
    $region4: #{tpu_custom_call.1} parent=1 // loop_header_branch
      %17 = sbr.rel (%p15) target = $region8
    $region5: #{tpu_custom_call.1} parent=1 // loop_body
      %s19 = ssub.s32 %s14, 1
      %s20 = ssub.s32 %s14, 2
      %s27 = sadd.s32 1, %s22
      %p28 = scmp.ge.s32.totalorder %s27, 1
      %s29 = scalar_select %p28, 0, %s27
      %s30 = sadd.s32 1, %s21
      %s31 = scalar_select %p28, %s30, %s21
      %p32 = scmp.ge.s32.totalorder %s31, 2
      %s33 = scalar_select %p32, 0, %s31
      %s34 = ssub.s32 %s21, %s33
      %p35 = scmp.eq.s32.totalorder %s34, 0
      %s37 = sadd.s32 %s36, 1
      %s38 = scalar_select %p35, %s36, %s37
      %p41 = pneg %p35
      %p42 = scmp.eq.s32.totalorder %s14, 1
      %p43 = por %p41, %p42
      %p44 = scmp.ne.s32.totalorder %s36, %s39
      %p45 = scmp.eq.s32.totalorder %s14, 0
      %p46 = por %p44, %p45
      %p47 = scmp.ne.s32.totalorder %s36, %s39
      %p48 = scmp.eq.s32.totalorder %s19, 1
      %p49 = por %p47, %p48
      %p50 = scmp.ne.s32.totalorder %s39, %s40
      %p51 = scmp.eq.s32.totalorder %s19, 0
      %p52 = por %p50, %p51
      %p53 = scmp.ne.s32.totalorder %s39, %s40
      %p54 = scmp.eq.s32.totalorder %s20, 1
      %p55 = por %p53, %p54
      %p57 = scmp.ne.s32.totalorder %s40, %s56
      %p58 = scmp.eq.s32.totalorder %s20, 0
      %p59 = por %p57, %p58
      %s61 = sadd.s32 %s60, 1
      %p64 = scmp.eq.s32.totalorder %s14, 1
      %p65 = scmp.ne.s32.totalorder %s60, %s62
      %p66 = scmp.eq.s32.totalorder %s14, 0
      %p67 = por %p65, %p66
      %p68 = scmp.ne.s32.totalorder %s60, %s62
      %p69 = scmp.eq.s32.totalorder %s19, 1
      %p70 = por %p68, %p69
      %p71 = scmp.ne.s32.totalorder %s62, %s63
      %p72 = scmp.eq.s32.totalorder %s19, 0
      %p73 = por %p71, %p72
      %p74 = scmp.ne.s32.totalorder %s62, %s63
      %p75 = scmp.eq.s32.totalorder %s20, 1
      %p76 = por %p74, %p75
      %p78 = scmp.ne.s32.totalorder %s63, %s77
      %p79 = scmp.eq.s32.totalorder %s20, 0
      %p80 = por %p78, %p79
      %s82 = sadd.s32 %s81, 1
      %p85 = scmp.eq.s32.totalorder %s14, 1
      %p86 = scmp.ne.s32.totalorder %s81, %s83
      %p87 = scmp.eq.s32.totalorder %s14, 0
      %p88 = por %p86, %p87
      %p89 = scmp.ne.s32.totalorder %s81, %s83
      %p90 = scmp.eq.s32.totalorder %s19, 1
      %p91 = por %p89, %p90
      %p92 = scmp.ne.s32.totalorder %s83, %s84
      %p93 = scmp.eq.s32.totalorder %s19, 0
      %p94 = por %p92, %p93
      %p95 = scmp.ne.s32.totalorder %s83, %s84
      %p96 = scmp.eq.s32.totalorder %s20, 1
      %p97 = por %p95, %p96
      %p99 = scmp.ne.s32.totalorder %s84, %s98
      %p100 = scmp.eq.s32.totalorder %s20, 0
      %p101 = por %p99, %p100
      %s103 = sadd.s32 %s102, 1
      %p106 = scmp.eq.s32.totalorder %s14, 1
      %p107 = scmp.ne.s32.totalorder %s102, %s104
      %p108 = scmp.eq.s32.totalorder %s14, 0
      %p109 = por %p107, %p108
      %p110 = scmp.ne.s32.totalorder %s102, %s104
      %p111 = scmp.eq.s32.totalorder %s19, 1
      %p112 = por %p110, %p111
      %p113 = scmp.ne.s32.totalorder %s104, %s105
      %p114 = scmp.eq.s32.totalorder %s19, 0
      %p115 = por %p113, %p114
      %p116 = scmp.ne.s32.totalorder %s104, %s105
      %p117 = scmp.eq.s32.totalorder %s20, 1
      %p118 = por %p116, %p117
      %p120 = scmp.ne.s32.totalorder %s105, %s119
      %p121 = scmp.eq.s32.totalorder %s20, 0
      %p122 = por %p120, %p121
      %s123 = ssub.s32 %s21, %s33
      %s124 = ssub.s32 %s22, %s29
      %s125 = sor.u32 %s123, %s124
      %p126 = scmp.eq.s32.totalorder %s125, 0
      %s128 = sadd.s32 %s127, 1
      %s129 = scalar_select %p126, %s127, %s128
      %p132 = pneg %p126
      %p133 = scmp.eq.s32.totalorder %s14, 1
      %p134 = por %p132, %p133
      %p135 = scmp.ne.s32.totalorder %s127, %s130
      %p136 = scmp.eq.s32.totalorder %s14, 0
      %p137 = por %p135, %p136
      %p138 = scmp.ne.s32.totalorder %s127, %s130
      %p139 = scmp.eq.s32.totalorder %s19, 1
      %p140 = por %p138, %p139
      %p141 = scmp.ne.s32.totalorder %s130, %s131
      %p142 = scmp.eq.s32.totalorder %s19, 0
      %p143 = por %p141, %p142
      %p144 = scmp.ne.s32.totalorder %s130, %s131
      %p145 = scmp.eq.s32.totalorder %s20, 1
      %p146 = por %p144, %p145
      %p148 = scmp.ne.s32.totalorder %s131, %s147
      %p149 = scmp.eq.s32.totalorder %s20, 0
      %p150 = por %p148, %p149
      %s151 = ssub.s32 %s21, %s33
      %s152 = ssub.s32 %s22, %s29
      %s153 = sor.u32 %s151, %s152
      %p154 = scmp.eq.s32.totalorder %s153, 0
      %s156 = sadd.s32 %s155, 1
      %s157 = scalar_select %p154, %s155, %s156
      %p160 = pneg %p154
      %p161 = scmp.eq.s32.totalorder %s14, 1
      %p162 = por %p160, %p161
      %p163 = scmp.ne.s32.totalorder %s155, %s158
      %p164 = scmp.eq.s32.totalorder %s14, 0
      %p165 = por %p163, %p164
      %p166 = scmp.ne.s32.totalorder %s155, %s158
      %p167 = scmp.eq.s32.totalorder %s19, 1
      %p168 = por %p166, %p167
      %p169 = scmp.ne.s32.totalorder %s158, %s159
      %p170 = scmp.eq.s32.totalorder %s19, 0
      %p171 = por %p169, %p170
      %p172 = scmp.ne.s32.totalorder %s158, %s159
      %p173 = scmp.eq.s32.totalorder %s20, 1
      %p174 = por %p172, %p173
      %p176 = scmp.ne.s32.totalorder %s159, %s175
      %p177 = scmp.eq.s32.totalorder %s20, 0
      %p178 = por %p176, %p177
      %p179 = scmp.le.s32.totalorder 1, %s14
      %p180 = scmp.lt.s32.totalorder %s14, 3
      %p181 = pnand %p179, %p180
      %p182 = pneg %p181
      // Predicated region
      $region9: #{tpu_custom_call.1} parent=5 // pred_check
        _
      $region10: #{tpu_custom_call.1} parent=5 // pred_check_branch
        %184 = sbr.rel (%p181) target = $region12
      $region11: #{tpu_custom_call.1} parent=5 // pred_region
        %s185 = ssub.s32 %s14, 1
        // Predicated region
        $region13: #{tpu_custom_call.1} parent=11 // pred_check
          %p186 = pneg %p73
        $region14: #{tpu_custom_call.1} parent=11 // pred_check_branch
          %188 = sbr.rel (%p186) target = $region16
        $region15: #{tpu_custom_call.1} parent=11 // pred_region
          _
        $region16: #{tpu_custom_call.1} parent=11 // pred_fallthru
          _
        // Predicated region
        $region17: #{tpu_custom_call.1} parent=11 // pred_check
          %p189 = pneg %p94
        $region18: #{tpu_custom_call.1} parent=11 // pred_check_branch
          %191 = sbr.rel (%p189) target = $region20
        $region19: #{tpu_custom_call.1} parent=11 // pred_region
          _
        $region20: #{tpu_custom_call.1} parent=11 // pred_fallthru
          _
        // Predicated region
        $region21: #{tpu_custom_call.1} parent=11 // pred_check
          %p192 = pneg %p115
        $region22: #{tpu_custom_call.1} parent=11 // pred_check_branch
          %194 = sbr.rel (%p192) target = $region24
        $region23: #{tpu_custom_call.1} parent=11 // pred_region
          _
        $region24: #{tpu_custom_call.1} parent=11 // pred_fallthru
          _
      $region12: #{tpu_custom_call.1} parent=5 // pred_fallthru
        _
      %p195 = scmp.lt.s32.totalorder %s14, 2
      // Predicated region
      $region25: #{tpu_custom_call.1} parent=5 // pred_check
        %p196 = pneg %p195
      $region26: #{tpu_custom_call.1} parent=5 // pred_check_branch
        %198 = sbr.rel (%p196) target = $region28
      $region27: #{tpu_custom_call.1} parent=5 // pred_region
        // Predicated region
        $region29: #{tpu_custom_call.1} parent=27 // pred_check
          %p199 = pneg %p46
        $region30: #{tpu_custom_call.1} parent=27 // pred_check_branch
          %201 = sbr.rel (%p199) target = $region32
        $region31: #{tpu_custom_call.1} parent=27 // pred_region
          %p202 = scmp.lt.s32.totalorder %s21, 1
          %s203 = scalar_select %p202, %s21, 1
          %s204 = smul.addr %s203, 4
          %s205 = smul.addr %s204, 8
          %s206 = scalar_lea.vmem %s0, %s205
        $region32: #{tpu_custom_call.1} parent=27 // pred_fallthru
          _
        // Predicated region
        $region33: #{tpu_custom_call.1} parent=27 // pred_check
          %p207 = pneg %p137
        $region34: #{tpu_custom_call.1} parent=27 // pred_check_branch
          %209 = sbr.rel (%p207) target = $region36
        $region35: #{tpu_custom_call.1} parent=27 // pred_region
          %s210 = smul.u32 2, %s22
          %p211 = scmp.lt.s32.totalorder %s21, 1
          %s212 = scalar_select %p211, %s21, 1
          %p213 = scmp.lt.s32.totalorder %s210, 1
          %s214 = scalar_select %p213, %s210, 1
          %s215 = smul.addr %s212, 18
          %s216 = sadd.s32 %s214, %s215
          %s217 = smul.addr %s216, 4
          %s218 = scalar_lea.vmem %s4, %s217
          %s219 = smul.u32 2, %s22
        $region36: #{tpu_custom_call.1} parent=27 // pred_fallthru
          _
      $region28: #{tpu_custom_call.1} parent=5 // pred_fallthru
        _
      %p220 = scmp.le.s32.totalorder 1, %s14
      %p221 = scmp.lt.s32.totalorder %s14, 3
      %p222 = pnand %p220, %p221
      %p223 = pneg %p222
      // Predicated region
      $region37: #{tpu_custom_call.1} parent=5 // pred_check
        _
      $region38: #{tpu_custom_call.1} parent=5 // pred_check_branch
        %225 = sbr.rel (%p222) target = $region40
      $region39: #{tpu_custom_call.1} parent=5 // pred_region
        %s226 = ssub.s32 %s14, 1
        %p227 = scmp.lt.s32.totalorder %s23, 1
        %s228 = scalar_select %p227, %s23, 1
        %s229 = smul.addr %s228, 4
        %s230 = smul.addr %s229, 8
        %s231 = scalar_lea.vmem %s0, %s230
        %p232 = pneg %p52
        %p233 = pneg %p49
        %p234 = pneg %p73
        %p235 = pneg %p70
        %p236 = pneg %p94
        %p237 = pneg %p91
        %p238 = pneg %p115
        %p239 = pneg %p112
        %s240 = smul.u32 2, %s24
        %p241 = scmp.lt.s32.totalorder %s23, 1
        %s242 = scalar_select %p241, %s23, 1
        %p243 = scmp.lt.s32.totalorder %s240, 1
        %s244 = scalar_select %p243, %s240, 1
        %s245 = smul.addr %s242, 18
        %s246 = sadd.s32 %s244, %s245
        %s247 = smul.addr %s246, 4
        %s248 = scalar_lea.vmem %s4, %s247
        %p249 = pneg %p143
        %p250 = pneg %p140
        %p251 = pneg %p171
        %p252 = pneg %p168
        %s253 = sand.u32 %s158, 1
        %s254 = scalar_lea.sflag [#allocation3], %s253
        %s255 = sand.u32 %s158, 1
        %s256 = smul.addr %s255, 16
        %s257 = scalar_lea.vmem [#allocation2], %s256
        %p258 = scmp.lt.s32.totalorder %s23, 1
        %s259 = scalar_select %p258, %s23, 1
        %s260 = smul.addr %s259, 4
        %s261 = smul.addr %s260, 8
        %s262 = scalar_lea.vmem %s0, %s261
        %s263 = smul.u32 2, %s24
        %p264 = scmp.lt.s32.totalorder %s23, 1
        %s265 = scalar_select %p264, %s23, 1
        %p266 = scmp.lt.s32.totalorder %s263, 1
        %s267 = scalar_select %p266, %s263, 1
        %s268 = smul.addr %s265, 18
        %s269 = sadd.s32 %s267, %s268
        %s270 = smul.addr %s269, 4
        %s271 = scalar_lea.vmem %s4, %s270
        %s272 = smul.u32 2, %s24
        %s273 = smul.u32 2, %s24
        %v274 = vld [vmem:[%s262] sm:$0xff]
        %v275 = vld [vmem:[%s262 + $0x8] sm:$0xff]
        %v276 = vld [vmem:[%s262 + $0x10] sm:$0xff]
        %v277 = vld [vmem:[%s262 + $0x18] sm:$0xff]
        %v278 = vld [vmem:[%s1] sm:$0xff]
        %v279 = vld [vmem:[%s1 + $0x8] sm:$0xff]
        %v280 = vld [vmem:[%s1 + $0x10] sm:$0xff]
        %v281 = vld [vmem:[%s1 + $0x18] sm:$0xff]
        %283 = vset.pattern.permute.xlu0 0
        %284 = vperm.xlu0 %283, %v274
        %v285 = vpop.permute.xlu0 %284
        %288 = vset.pattern.permute.xlu0 0
        %289 = vperm.xlu0 %288, %v275
        %v290 = vpop.permute.xlu0 %289
        %293 = vset.pattern.permute.xlu0 0
        %294 = vperm.xlu0 %293, %v276
        %v295 = vpop.permute.xlu0 %294
        %298 = vset.pattern.permute.xlu0 0
        %299 = vperm.xlu0 %298, %v277
        %v300 = vpop.permute.xlu0 %299
        %v302 = vmul.f32 %v285, %v278
        %v303 = vmul.f32 %v290, %v279
        %v304 = vmul.f32 %v295, %v280
        %v305 = vmul.f32 %v300, %v281
        %vm306 = vcmask 31744
        %v307 = vsel %vm306, %v302, 0.0
        %v308 = vsel %vm306, %v303, 0.0
        %v309 = vadd.f32 %v307, %v308
        %v310 = vsel %vm306, %v304, 0.0
        %v311 = vadd.f32 %v309, %v310
        %v312 = vsel %vm306, %v305, 0.0
        %v313 = vadd.f32 %v311, %v312
        %v314 = vrot.slane %v313, 4
        %v315 = vadd.f32 %v313, %v314
        %v316 = vrot.slane %v315, 2
        %v317 = vadd.f32 %v315, %v316
        %v318 = vrot.slane %v317, 1
        %v319 = vadd.f32 %v317, %v318
        %v320 = vmul.f32 %v319, 0.17677669
        %v321 = vld [vmem:[%s2] sm:$0x1]
        %v322 = vadd.f32 %v320, %v321
        %v323 = vld [vmem:[%s3] sm:$0xff]
        %v324 = vmul.f32 %v323, 0.16666667
        %v325 = vlaneseq
        %v326 = vshrl.u32 %v325, 7
        %v327 = vsub.s32 0, %v326
        %v328 = vrot.slane %v322, %v327
        %v329 = vmul.f32 %v324, %v328
        %v330 = vmul.f32 %v329, %v329
        %v331 = vsel %vm306, %v330, 0.0
        %332 = vadd.xlane.f32.xlu0 %v331
        %v333 = vpop.xlane.xlu0 %332
        %v334 = vadd.f32 %v333, 0.0
        %v335 = vld [vmem:[%s271] sm:$0xff]
        %s336 = scalar_lea.vmem %s3, 8
        %v337 = vld [vmem:[%s336] sm:$0xff]
        %v338 = vmul.f32 %v337, 0.16666667
        %v339 = vmul.f32 %v338, %v328
        %v340 = vmul.f32 %v339, %v339
        %v341 = vsel %vm306, %v340, 0.0
        %342 = vadd.xlane.f32.xlu0 %v341
        %v343 = vpop.xlane.xlu0 %342
        %v344 = vadd.f32 %v334, %v343
        %s345 = scalar_lea.vmem %s271, 8
        %v346 = vld [vmem:[%s345] sm:$0xff]
        %v348 = vcombine.high %v346, %v346
        %v350 = vsel %vm306, %v339, 0
        %vm352 = vcmask 1043456
        %v353 = vsel %vm352, %v346, 0
        %v355 = vsel %vm352, %v348, 0
        %357 = vmatprep.subr.mxu0 0.0
        %358 = vmatpush1.msra.mxu0 0.0
        %359 = vmatprep.subr.mxu0 0.0
        %360 = vmatpush1.msra.mxu0 0.0
        %361 = vmatprep.subr.mxu0 0.0
        %362 = vmatpush1.msra.mxu0 0.0
        %363 = vmatprep.subr.mxu0 0.0
        %364 = vmatpush1.msra.mxu0 0.0
        %365 = vmatprep.subr.mxu0 0.0
        %366 = vmatpush1.msra.mxu0 0.0
        %367 = vmatprep.subr.mxu0 0.0
        %368 = vmatpush1.msra.mxu0 0.0
        %369 = vmatprep.subr.mxu0 0.0
        %370 = vmatpush1.msra.mxu0 0.0
        %371 = vmatprep.subr.mxu0 0.0
        %372 = vmatpush1.msra.mxu0 0.0
        %373 = vmatprep.subr.mxu0 0.0
        %374 = vmatpush1.msra.mxu0 0.0
        %375 = vmatprep.subr.mxu0 0.0
        %376 = vmatpush1.msra.mxu0 0.0
        %377 = vmatprep.subr.mxu0 0.0
        %378 = vmatpush1.msra.mxu0 0.0
        %379 = vmatprep.subr.mxu0 0.0
        %380 = vmatpush1.msra.mxu0 0.0
        %381 = vmatprep.subr.mxu0 0.0
        %382 = vmatpush1.msra.mxu0 0.0
        %383 = vmatprep.subr.mxu0 0.0
        %384 = vmatpush1.msra.mxu0 0.0
        %385 = vmatprep.subr.mxu0 0.0
        %386 = vmatpush1.msra.mxu0 0.0
        %387 = vmatprep.subr.mxu0 %v355
        %388 = vmatpush1.msra.mxu0 %v353
        %389 = vmatprep.subr.mxu0 0.0
        %390 = vmatpush2.msra.mxu0 0.0
        %391 = vmatprep.subr.mxu0 0.0
        %392 = vmatpush2.msra.mxu0 0.0
        %393 = vmatprep.subr.mxu0 0.0
        %394 = vmatpush2.msra.mxu0 0.0
        %395 = vmatprep.subr.mxu0 0.0
        %396 = vmatpush2.msra.mxu0 0.0
        %397 = vmatprep.subr.mxu0 0.0
        %398 = vmatpush2.msra.mxu0 0.0
        %399 = vmatprep.subr.mxu0 0.0
        %400 = vmatpush2.msra.mxu0 0.0
        %401 = vmatprep.subr.mxu0 0.0
        %402 = vmatpush2.msra.mxu0 0.0
        %403 = vmatprep.subr.mxu0 0.0
        %404 = vmatpush2.msra.mxu0 0.0
        %405 = vmatprep.subr.mxu0 0.0
        %406 = vmatpush2.msra.mxu0 0.0
        %407 = vmatprep.subr.mxu0 0.0
        %408 = vmatpush2.msra.mxu0 0.0
        %409 = vmatprep.subr.mxu0 0.0
        %410 = vmatpush2.msra.mxu0 0.0
        %411 = vmatprep.subr.mxu0 0.0
        %412 = vmatpush2.msra.mxu0 0.0
        %413 = vmatprep.subr.mxu0 0.0
        %414 = vmatpush2.msra.mxu0 0.0
        %415 = vmatprep.subr.mxu0 0.0
        %416 = vmatpush2.msra.mxu0 0.0
        %417 = vmatprep.subr.mxu0 0.0
        %418 = vmatpush2.msra.mxu0 0.0
        %419 = vmatprep.subr.mxu0 0.0
        %420 = vmatpush2.msra.mxu0 0.0
        %421 = vmatprep.mubr.f32.mxu0 0.0
        %422 = vmatmul.mubr.f32.gmra.mxu0 %v350
        %v423 = vpop.f32.mrf.mxu0
        %v424 = vadd.f32 0.0, %v423
        %v425 = vpop.f32.mrf.mxu0
        %v426 = vadd.f32 0.0, %v425
        %427 = vdwg.mxu0
        %v429 = vcombine.high %v335, %v335
        %v431 = vsel %vm306, %v329, 0
        %v433 = vsel %vm352, %v335, 0
        %v435 = vsel %vm352, %v429, 0
        %437 = vmatprep.subr.mxu0 0.0
        %438 = vmatpush1.msra.mxu0 0.0
        %439 = vmatprep.subr.mxu0 0.0
        %440 = vmatpush1.msra.mxu0 0.0
        %441 = vmatprep.subr.mxu0 0.0
        %442 = vmatpush1.msra.mxu0 0.0
        %443 = vmatprep.subr.mxu0 0.0
        %444 = vmatpush1.msra.mxu0 0.0
        %445 = vmatprep.subr.mxu0 0.0
        %446 = vmatpush1.msra.mxu0 0.0
        %447 = vmatprep.subr.mxu0 0.0
        %448 = vmatpush1.msra.mxu0 0.0
        %449 = vmatprep.subr.mxu0 0.0
        %450 = vmatpush1.msra.mxu0 0.0
        %451 = vmatprep.subr.mxu0 0.0
        %452 = vmatpush1.msra.mxu0 0.0
        %453 = vmatprep.subr.mxu0 0.0
        %454 = vmatpush1.msra.mxu0 0.0
        %455 = vmatprep.subr.mxu0 0.0
        %456 = vmatpush1.msra.mxu0 0.0
        %457 = vmatprep.subr.mxu0 0.0
        %458 = vmatpush1.msra.mxu0 0.0
        %459 = vmatprep.subr.mxu0 0.0
        %460 = vmatpush1.msra.mxu0 0.0
        %461 = vmatprep.subr.mxu0 0.0
        %462 = vmatpush1.msra.mxu0 0.0
        %463 = vmatprep.subr.mxu0 0.0
        %464 = vmatpush1.msra.mxu0 0.0
        %465 = vmatprep.subr.mxu0 0.0
        %466 = vmatpush1.msra.mxu0 0.0
        %467 = vmatprep.subr.mxu0 %v435
        %468 = vmatpush1.msra.mxu0 %v433
        %469 = vmatprep.subr.mxu0 0.0
        %470 = vmatpush2.msra.mxu0 0.0
        %471 = vmatprep.subr.mxu0 0.0
        %472 = vmatpush2.msra.mxu0 0.0
        %473 = vmatprep.subr.mxu0 0.0
        %474 = vmatpush2.msra.mxu0 0.0
        %475 = vmatprep.subr.mxu0 0.0
        %476 = vmatpush2.msra.mxu0 0.0
        %477 = vmatprep.subr.mxu0 0.0
        %478 = vmatpush2.msra.mxu0 0.0
        %479 = vmatprep.subr.mxu0 0.0
        %480 = vmatpush2.msra.mxu0 0.0
        %481 = vmatprep.subr.mxu0 0.0
        %482 = vmatpush2.msra.mxu0 0.0
        %483 = vmatprep.subr.mxu0 0.0
        %484 = vmatpush2.msra.mxu0 0.0
        %485 = vmatprep.subr.mxu0 0.0
        %486 = vmatpush2.msra.mxu0 0.0
        %487 = vmatprep.subr.mxu0 0.0
        %488 = vmatpush2.msra.mxu0 0.0
        %489 = vmatprep.subr.mxu0 0.0
        %490 = vmatpush2.msra.mxu0 0.0
        %491 = vmatprep.subr.mxu0 0.0
        %492 = vmatpush2.msra.mxu0 0.0
        %493 = vmatprep.subr.mxu0 0.0
        %494 = vmatpush2.msra.mxu0 0.0
        %495 = vmatprep.subr.mxu0 0.0
        %496 = vmatpush2.msra.mxu0 0.0
        %497 = vmatprep.subr.mxu0 0.0
        %498 = vmatpush2.msra.mxu0 0.0
        %499 = vmatprep.subr.mxu0 0.0
        %500 = vmatpush2.msra.mxu0 0.0
        %501 = vmatprep.mubr.f32.mxu0 0.0
        %502 = vmatmul.mubr.f32.gmra.mxu0 %v431
        %v503 = vpop.f32.mrf.mxu0
        %v504 = vadd.f32 %v424, %v503
        %v505 = vpop.f32.mrf.mxu0
        %v506 = vadd.f32 %v426, %v505
        %507 = vdwg.mxu0
        %s508 = scalar_lea.vmem %s3, 16
        %v509 = vld [vmem:[%s508] sm:$0xff]
        %v510 = vmul.f32 %v509, 0.16666667
        %v511 = vmul.f32 %v510, %v328
        %v512 = vmul.f32 %v511, %v511
        %v513 = vsel %vm306, %v512, 0.0
        %514 = vadd.xlane.f32.xlu0 %v513
        %v515 = vpop.xlane.xlu0 %514
        %v516 = vadd.f32 %v344, %v515
        %s517 = scalar_lea.vmem %s271, 16
        %v518 = vld [vmem:[%s517] sm:$0xff]
        %v520 = vcombine.high %v518, %v518
        %v522 = vsel %vm306, %v511, 0
        %v524 = vsel %vm352, %v518, 0
        %v526 = vsel %vm352, %v520, 0
        %528 = vmatprep.subr.mxu0 0.0
        %529 = vmatpush1.msra.mxu0 0.0
        %530 = vmatprep.subr.mxu0 0.0
        %531 = vmatpush1.msra.mxu0 0.0
        %532 = vmatprep.subr.mxu0 0.0
        %533 = vmatpush1.msra.mxu0 0.0
        %534 = vmatprep.subr.mxu0 0.0
        %535 = vmatpush1.msra.mxu0 0.0
        %536 = vmatprep.subr.mxu0 0.0
        %537 = vmatpush1.msra.mxu0 0.0
        %538 = vmatprep.subr.mxu0 0.0
        %539 = vmatpush1.msra.mxu0 0.0
        %540 = vmatprep.subr.mxu0 0.0
        %541 = vmatpush1.msra.mxu0 0.0
        %542 = vmatprep.subr.mxu0 0.0
        %543 = vmatpush1.msra.mxu0 0.0
        %544 = vmatprep.subr.mxu0 0.0
        %545 = vmatpush1.msra.mxu0 0.0
        %546 = vmatprep.subr.mxu0 0.0
        %547 = vmatpush1.msra.mxu0 0.0
        %548 = vmatprep.subr.mxu0 0.0
        %549 = vmatpush1.msra.mxu0 0.0
        %550 = vmatprep.subr.mxu0 0.0
        %551 = vmatpush1.msra.mxu0 0.0
        %552 = vmatprep.subr.mxu0 0.0
        %553 = vmatpush1.msra.mxu0 0.0
        %554 = vmatprep.subr.mxu0 0.0
        %555 = vmatpush1.msra.mxu0 0.0
        %556 = vmatprep.subr.mxu0 0.0
        %557 = vmatpush1.msra.mxu0 0.0
        %558 = vmatprep.subr.mxu0 %v526
        %559 = vmatpush1.msra.mxu0 %v524
        %560 = vmatprep.subr.mxu0 0.0
        %561 = vmatpush2.msra.mxu0 0.0
        %562 = vmatprep.subr.mxu0 0.0
        %563 = vmatpush2.msra.mxu0 0.0
        %564 = vmatprep.subr.mxu0 0.0
        %565 = vmatpush2.msra.mxu0 0.0
        %566 = vmatprep.subr.mxu0 0.0
        %567 = vmatpush2.msra.mxu0 0.0
        %568 = vmatprep.subr.mxu0 0.0
        %569 = vmatpush2.msra.mxu0 0.0
        %570 = vmatprep.subr.mxu0 0.0
        %571 = vmatpush2.msra.mxu0 0.0
        %572 = vmatprep.subr.mxu0 0.0
        %573 = vmatpush2.msra.mxu0 0.0
        %574 = vmatprep.subr.mxu0 0.0
        %575 = vmatpush2.msra.mxu0 0.0
        %576 = vmatprep.subr.mxu0 0.0
        %577 = vmatpush2.msra.mxu0 0.0
        %578 = vmatprep.subr.mxu0 0.0
        %579 = vmatpush2.msra.mxu0 0.0
        %580 = vmatprep.subr.mxu0 0.0
        %581 = vmatpush2.msra.mxu0 0.0
        %582 = vmatprep.subr.mxu0 0.0
        %583 = vmatpush2.msra.mxu0 0.0
        %584 = vmatprep.subr.mxu0 0.0
        %585 = vmatpush2.msra.mxu0 0.0
        %586 = vmatprep.subr.mxu0 0.0
        %587 = vmatpush2.msra.mxu0 0.0
        %588 = vmatprep.subr.mxu0 0.0
        %589 = vmatpush2.msra.mxu0 0.0
        %590 = vmatprep.subr.mxu0 0.0
        %591 = vmatpush2.msra.mxu0 0.0
        %592 = vmatprep.mubr.f32.mxu0 0.0
        %593 = vmatmul.mubr.f32.gmra.mxu0 %v522
        %v594 = vpop.f32.mrf.mxu0
        %v595 = vadd.f32 0.0, %v594
        %v596 = vpop.f32.mrf.mxu0
        %v597 = vadd.f32 0.0, %v596
        %598 = vdwg.mxu0
        %v599 = vadd.f32 %v504, %v595
        %v600 = vadd.f32 %v506, %v597
        %s601 = scalar_lea.vmem %s3, 24
        %v602 = vld [vmem:[%s601] sm:$0xff]
        %v603 = vmul.f32 %v602, 0.16666667
        %v604 = vmul.f32 %v603, %v328
        %v605 = vmul.f32 %v604, %v604
        %v606 = vsel %vm306, %v605, 0.0
        %607 = vadd.xlane.f32.xlu0 %v606
        %v608 = vpop.xlane.xlu0 %607
        %v609 = vadd.f32 %v516, %v608
        %s610 = scalar_lea.vmem %s271, 24
        %v611 = vld [vmem:[%s610] sm:$0xff]
        %v613 = vcombine.high %v611, %v611
        %v615 = vsel %vm306, %v604, 0
        %v617 = vsel %vm352, %v611, 0
        %v619 = vsel %vm352, %v613, 0
        %621 = vmatprep.subr.mxu0 0.0
        %622 = vmatpush1.msra.mxu0 0.0
        %623 = vmatprep.subr.mxu0 0.0
        %624 = vmatpush1.msra.mxu0 0.0
        %625 = vmatprep.subr.mxu0 0.0
        %626 = vmatpush1.msra.mxu0 0.0
        %627 = vmatprep.subr.mxu0 0.0
        %628 = vmatpush1.msra.mxu0 0.0
        %629 = vmatprep.subr.mxu0 0.0
        %630 = vmatpush1.msra.mxu0 0.0
        %631 = vmatprep.subr.mxu0 0.0
        %632 = vmatpush1.msra.mxu0 0.0
        %633 = vmatprep.subr.mxu0 0.0
        %634 = vmatpush1.msra.mxu0 0.0
        %635 = vmatprep.subr.mxu0 0.0
        %636 = vmatpush1.msra.mxu0 0.0
        %637 = vmatprep.subr.mxu0 0.0
        %638 = vmatpush1.msra.mxu0 0.0
        %639 = vmatprep.subr.mxu0 0.0
        %640 = vmatpush1.msra.mxu0 0.0
        %641 = vmatprep.subr.mxu0 0.0
        %642 = vmatpush1.msra.mxu0 0.0
        %643 = vmatprep.subr.mxu0 0.0
        %644 = vmatpush1.msra.mxu0 0.0
        %645 = vmatprep.subr.mxu0 0.0
        %646 = vmatpush1.msra.mxu0 0.0
        %647 = vmatprep.subr.mxu0 0.0
        %648 = vmatpush1.msra.mxu0 0.0
        %649 = vmatprep.subr.mxu0 0.0
        %650 = vmatpush1.msra.mxu0 0.0
        %651 = vmatprep.subr.mxu0 %v619
        %652 = vmatpush1.msra.mxu0 %v617
        %653 = vmatprep.subr.mxu0 0.0
        %654 = vmatpush2.msra.mxu0 0.0
        %655 = vmatprep.subr.mxu0 0.0
        %656 = vmatpush2.msra.mxu0 0.0
        %657 = vmatprep.subr.mxu0 0.0
        %658 = vmatpush2.msra.mxu0 0.0
        %659 = vmatprep.subr.mxu0 0.0
        %660 = vmatpush2.msra.mxu0 0.0
        %661 = vmatprep.subr.mxu0 0.0
        %662 = vmatpush2.msra.mxu0 0.0
        %663 = vmatprep.subr.mxu0 0.0
        %664 = vmatpush2.msra.mxu0 0.0
        %665 = vmatprep.subr.mxu0 0.0
        %666 = vmatpush2.msra.mxu0 0.0
        %667 = vmatprep.subr.mxu0 0.0
        %668 = vmatpush2.msra.mxu0 0.0
        %669 = vmatprep.subr.mxu0 0.0
        %670 = vmatpush2.msra.mxu0 0.0
        %671 = vmatprep.subr.mxu0 0.0
        %672 = vmatpush2.msra.mxu0 0.0
        %673 = vmatprep.subr.mxu0 0.0
        %674 = vmatpush2.msra.mxu0 0.0
        %675 = vmatprep.subr.mxu0 0.0
        %676 = vmatpush2.msra.mxu0 0.0
        %677 = vmatprep.subr.mxu0 0.0
        %678 = vmatpush2.msra.mxu0 0.0
        %679 = vmatprep.subr.mxu0 0.0
        %680 = vmatpush2.msra.mxu0 0.0
        %681 = vmatprep.subr.mxu0 0.0
        %682 = vmatpush2.msra.mxu0 0.0
        %683 = vmatprep.subr.mxu0 0.0
        %684 = vmatpush2.msra.mxu0 0.0
        %685 = vmatprep.mubr.f32.mxu0 0.0
        %686 = vmatmul.mubr.f32.gmra.mxu0 %v615
        %v687 = vpop.f32.mrf.mxu0
        %v688 = vadd.f32 0.0, %v687
        %v689 = vpop.f32.mrf.mxu0
        %v690 = vadd.f32 0.0, %v689
        %691 = vdwg.mxu0
        %v692 = vadd.f32 %v599, %v688
        %v693 = vadd.f32 %v600, %v690
        %s694 = scalar_lea.vmem %s3, 32
        %v695 = vld [vmem:[%s694] sm:$0xff]
        %v696 = vmul.f32 %v695, 0.16666667
        %v697 = vmul.f32 %v696, %v328
        %v698 = vmul.f32 %v697, %v697
        %v699 = vsel %vm306, %v698, 0.0
        %700 = vadd.xlane.f32.xlu0 %v699
        %v701 = vpop.xlane.xlu0 %700
        %v702 = vadd.f32 %v609, %v701
        %s703 = scalar_lea.vmem %s271, 32
        %v704 = vld [vmem:[%s703] sm:$0xff]
        %v706 = vcombine.high %v704, %v704
        %v708 = vsel %vm306, %v697, 0
        %v710 = vsel %vm352, %v704, 0
        %v712 = vsel %vm352, %v706, 0
        %714 = vmatprep.subr.mxu0 0.0
        %715 = vmatpush1.msra.mxu0 0.0
        %716 = vmatprep.subr.mxu0 0.0
        %717 = vmatpush1.msra.mxu0 0.0
        %718 = vmatprep.subr.mxu0 0.0
        %719 = vmatpush1.msra.mxu0 0.0
        %720 = vmatprep.subr.mxu0 0.0
        %721 = vmatpush1.msra.mxu0 0.0
        %722 = vmatprep.subr.mxu0 0.0
        %723 = vmatpush1.msra.mxu0 0.0
        %724 = vmatprep.subr.mxu0 0.0
        %725 = vmatpush1.msra.mxu0 0.0
        %726 = vmatprep.subr.mxu0 0.0
        %727 = vmatpush1.msra.mxu0 0.0
        %728 = vmatprep.subr.mxu0 0.0
        %729 = vmatpush1.msra.mxu0 0.0
        %730 = vmatprep.subr.mxu0 0.0
        %731 = vmatpush1.msra.mxu0 0.0
        %732 = vmatprep.subr.mxu0 0.0
        %733 = vmatpush1.msra.mxu0 0.0
        %734 = vmatprep.subr.mxu0 0.0
        %735 = vmatpush1.msra.mxu0 0.0
        %736 = vmatprep.subr.mxu0 0.0
        %737 = vmatpush1.msra.mxu0 0.0
        %738 = vmatprep.subr.mxu0 0.0
        %739 = vmatpush1.msra.mxu0 0.0
        %740 = vmatprep.subr.mxu0 0.0
        %741 = vmatpush1.msra.mxu0 0.0
        %742 = vmatprep.subr.mxu0 0.0
        %743 = vmatpush1.msra.mxu0 0.0
        %744 = vmatprep.subr.mxu0 %v712
        %745 = vmatpush1.msra.mxu0 %v710
        %746 = vmatprep.subr.mxu0 0.0
        %747 = vmatpush2.msra.mxu0 0.0
        %748 = vmatprep.subr.mxu0 0.0
        %749 = vmatpush2.msra.mxu0 0.0
        %750 = vmatprep.subr.mxu0 0.0
        %751 = vmatpush2.msra.mxu0 0.0
        %752 = vmatprep.subr.mxu0 0.0
        %753 = vmatpush2.msra.mxu0 0.0
        %754 = vmatprep.subr.mxu0 0.0
        %755 = vmatpush2.msra.mxu0 0.0
        %756 = vmatprep.subr.mxu0 0.0
        %757 = vmatpush2.msra.mxu0 0.0
        %758 = vmatprep.subr.mxu0 0.0
        %759 = vmatpush2.msra.mxu0 0.0
        %760 = vmatprep.subr.mxu0 0.0
        %761 = vmatpush2.msra.mxu0 0.0
        %762 = vmatprep.subr.mxu0 0.0
        %763 = vmatpush2.msra.mxu0 0.0
        %764 = vmatprep.subr.mxu0 0.0
        %765 = vmatpush2.msra.mxu0 0.0
        %766 = vmatprep.subr.mxu0 0.0
        %767 = vmatpush2.msra.mxu0 0.0
        %768 = vmatprep.subr.mxu0 0.0
        %769 = vmatpush2.msra.mxu0 0.0
        %770 = vmatprep.subr.mxu0 0.0
        %771 = vmatpush2.msra.mxu0 0.0
        %772 = vmatprep.subr.mxu0 0.0
        %773 = vmatpush2.msra.mxu0 0.0
        %774 = vmatprep.subr.mxu0 0.0
        %775 = vmatpush2.msra.mxu0 0.0
        %776 = vmatprep.subr.mxu0 0.0
        %777 = vmatpush2.msra.mxu0 0.0
        %778 = vmatprep.mubr.f32.mxu0 0.0
        %779 = vmatmul.mubr.f32.gmra.mxu0 %v708
        %v780 = vpop.f32.mrf.mxu0
        %v781 = vadd.f32 0.0, %v780
        %v782 = vpop.f32.mrf.mxu0
        %v783 = vadd.f32 0.0, %v782
        %784 = vdwg.mxu0
        %v785 = vadd.f32 %v692, %v781
        %v786 = vadd.f32 %v693, %v783
        %s787 = scalar_lea.vmem %s3, 40
        %v788 = vld [vmem:[%s787] sm:$0xff]
        %v789 = vmul.f32 %v788, 0.16666667
        %v790 = vmul.f32 %v789, %v328
        %v791 = vmul.f32 %v790, %v790
        %v792 = vsel %vm306, %v791, 0.0
        %793 = vadd.xlane.f32.xlu0 %v792
        %v794 = vpop.xlane.xlu0 %793
        %v795 = vadd.f32 %v702, %v794
        %s796 = scalar_lea.vmem %s271, 40
        %v797 = vld [vmem:[%s796] sm:$0xff]
        %v799 = vcombine.high %v797, %v797
        %v801 = vsel %vm306, %v790, 0
        %v803 = vsel %vm352, %v797, 0
        %v805 = vsel %vm352, %v799, 0
        %807 = vmatprep.subr.mxu0 0.0
        %808 = vmatpush1.msra.mxu0 0.0
        %809 = vmatprep.subr.mxu0 0.0
        %810 = vmatpush1.msra.mxu0 0.0
        %811 = vmatprep.subr.mxu0 0.0
        %812 = vmatpush1.msra.mxu0 0.0
        %813 = vmatprep.subr.mxu0 0.0
        %814 = vmatpush1.msra.mxu0 0.0
        %815 = vmatprep.subr.mxu0 0.0
        %816 = vmatpush1.msra.mxu0 0.0
        %817 = vmatprep.subr.mxu0 0.0
        %818 = vmatpush1.msra.mxu0 0.0
        %819 = vmatprep.subr.mxu0 0.0
        %820 = vmatpush1.msra.mxu0 0.0
        %821 = vmatprep.subr.mxu0 0.0
        %822 = vmatpush1.msra.mxu0 0.0
        %823 = vmatprep.subr.mxu0 0.0
        %824 = vmatpush1.msra.mxu0 0.0
        %825 = vmatprep.subr.mxu0 0.0
        %826 = vmatpush1.msra.mxu0 0.0
        %827 = vmatprep.subr.mxu0 0.0
        %828 = vmatpush1.msra.mxu0 0.0
        %829 = vmatprep.subr.mxu0 0.0
        %830 = vmatpush1.msra.mxu0 0.0
        %831 = vmatprep.subr.mxu0 0.0
        %832 = vmatpush1.msra.mxu0 0.0
        %833 = vmatprep.subr.mxu0 0.0
        %834 = vmatpush1.msra.mxu0 0.0
        %835 = vmatprep.subr.mxu0 0.0
        %836 = vmatpush1.msra.mxu0 0.0
        %837 = vmatprep.subr.mxu0 %v805
        %838 = vmatpush1.msra.mxu0 %v803
        %839 = vmatprep.subr.mxu0 0.0
        %840 = vmatpush2.msra.mxu0 0.0
        %841 = vmatprep.subr.mxu0 0.0
        %842 = vmatpush2.msra.mxu0 0.0
        %843 = vmatprep.subr.mxu0 0.0
        %844 = vmatpush2.msra.mxu0 0.0
        %845 = vmatprep.subr.mxu0 0.0
        %846 = vmatpush2.msra.mxu0 0.0
        %847 = vmatprep.subr.mxu0 0.0
        %848 = vmatpush2.msra.mxu0 0.0
        %849 = vmatprep.subr.mxu0 0.0
        %850 = vmatpush2.msra.mxu0 0.0
        %851 = vmatprep.subr.mxu0 0.0
        %852 = vmatpush2.msra.mxu0 0.0
        %853 = vmatprep.subr.mxu0 0.0
        %854 = vmatpush2.msra.mxu0 0.0
        %855 = vmatprep.subr.mxu0 0.0
        %856 = vmatpush2.msra.mxu0 0.0
        %857 = vmatprep.subr.mxu0 0.0
        %858 = vmatpush2.msra.mxu0 0.0
        %859 = vmatprep.subr.mxu0 0.0
        %860 = vmatpush2.msra.mxu0 0.0
        %861 = vmatprep.subr.mxu0 0.0
        %862 = vmatpush2.msra.mxu0 0.0
        %863 = vmatprep.subr.mxu0 0.0
        %864 = vmatpush2.msra.mxu0 0.0
        %865 = vmatprep.subr.mxu0 0.0
        %866 = vmatpush2.msra.mxu0 0.0
        %867 = vmatprep.subr.mxu0 0.0
        %868 = vmatpush2.msra.mxu0 0.0
        %869 = vmatprep.subr.mxu0 0.0
        %870 = vmatpush2.msra.mxu0 0.0
        %871 = vmatprep.mubr.f32.mxu0 0.0
        %872 = vmatmul.mubr.f32.gmra.mxu0 %v801
        %v873 = vpop.f32.mrf.mxu0
        %v874 = vadd.f32 0.0, %v873
        %v875 = vpop.f32.mrf.mxu0
        %v876 = vadd.f32 0.0, %v875
        %877 = vdwg.mxu0
        %v878 = vadd.f32 %v785, %v874
        %v879 = vadd.f32 %v786, %v876
        %s880 = scalar_lea.vmem %s3, 48
        %v881 = vld [vmem:[%s880] sm:$0xff]
        %v882 = vmul.f32 %v881, 0.16666667
        %v883 = vmul.f32 %v882, %v328
        %v884 = vmul.f32 %v883, %v883
        %v885 = vsel %vm306, %v884, 0.0
        %886 = vadd.xlane.f32.xlu0 %v885
        %v887 = vpop.xlane.xlu0 %886
        %v888 = vadd.f32 %v795, %v887
        %s889 = scalar_lea.vmem %s271, 48
        %v890 = vld [vmem:[%s889] sm:$0xff]
        %v892 = vcombine.high %v890, %v890
        %v894 = vsel %vm306, %v883, 0
        %v896 = vsel %vm352, %v890, 0
        %v898 = vsel %vm352, %v892, 0
        %900 = vmatprep.subr.mxu0 0.0
        %901 = vmatpush1.msra.mxu0 0.0
        %902 = vmatprep.subr.mxu0 0.0
        %903 = vmatpush1.msra.mxu0 0.0
        %904 = vmatprep.subr.mxu0 0.0
        %905 = vmatpush1.msra.mxu0 0.0
        %906 = vmatprep.subr.mxu0 0.0
        %907 = vmatpush1.msra.mxu0 0.0
        %908 = vmatprep.subr.mxu0 0.0
        %909 = vmatpush1.msra.mxu0 0.0
        %910 = vmatprep.subr.mxu0 0.0
        %911 = vmatpush1.msra.mxu0 0.0
        %912 = vmatprep.subr.mxu0 0.0
        %913 = vmatpush1.msra.mxu0 0.0
        %914 = vmatprep.subr.mxu0 0.0
        %915 = vmatpush1.msra.mxu0 0.0
        %916 = vmatprep.subr.mxu0 0.0
        %917 = vmatpush1.msra.mxu0 0.0
        %918 = vmatprep.subr.mxu0 0.0
        %919 = vmatpush1.msra.mxu0 0.0
        %920 = vmatprep.subr.mxu0 0.0
        %921 = vmatpush1.msra.mxu0 0.0
        %922 = vmatprep.subr.mxu0 0.0
        %923 = vmatpush1.msra.mxu0 0.0
        %924 = vmatprep.subr.mxu0 0.0
        %925 = vmatpush1.msra.mxu0 0.0
        %926 = vmatprep.subr.mxu0 0.0
        %927 = vmatpush1.msra.mxu0 0.0
        %928 = vmatprep.subr.mxu0 0.0
        %929 = vmatpush1.msra.mxu0 0.0
        %930 = vmatprep.subr.mxu0 %v898
        %931 = vmatpush1.msra.mxu0 %v896
        %932 = vmatprep.subr.mxu0 0.0
        %933 = vmatpush2.msra.mxu0 0.0
        %934 = vmatprep.subr.mxu0 0.0
        %935 = vmatpush2.msra.mxu0 0.0
        %936 = vmatprep.subr.mxu0 0.0
        %937 = vmatpush2.msra.mxu0 0.0
        %938 = vmatprep.subr.mxu0 0.0
        %939 = vmatpush2.msra.mxu0 0.0
        %940 = vmatprep.subr.mxu0 0.0
        %941 = vmatpush2.msra.mxu0 0.0
        %942 = vmatprep.subr.mxu0 0.0
        %943 = vmatpush2.msra.mxu0 0.0
        %944 = vmatprep.subr.mxu0 0.0
        %945 = vmatpush2.msra.mxu0 0.0
        %946 = vmatprep.subr.mxu0 0.0
        %947 = vmatpush2.msra.mxu0 0.0
        %948 = vmatprep.subr.mxu0 0.0
        %949 = vmatpush2.msra.mxu0 0.0
        %950 = vmatprep.subr.mxu0 0.0
        %951 = vmatpush2.msra.mxu0 0.0
        %952 = vmatprep.subr.mxu0 0.0
        %953 = vmatpush2.msra.mxu0 0.0
        %954 = vmatprep.subr.mxu0 0.0
        %955 = vmatpush2.msra.mxu0 0.0
        %956 = vmatprep.subr.mxu0 0.0
        %957 = vmatpush2.msra.mxu0 0.0
        %958 = vmatprep.subr.mxu0 0.0
        %959 = vmatpush2.msra.mxu0 0.0
        %960 = vmatprep.subr.mxu0 0.0
        %961 = vmatpush2.msra.mxu0 0.0
        %962 = vmatprep.subr.mxu0 0.0
        %963 = vmatpush2.msra.mxu0 0.0
        %964 = vmatprep.mubr.f32.mxu0 0.0
        %965 = vmatmul.mubr.f32.gmra.mxu0 %v894
        %v966 = vpop.f32.mrf.mxu0
        %v967 = vadd.f32 0.0, %v966
        %v968 = vpop.f32.mrf.mxu0
        %v969 = vadd.f32 0.0, %v968
        %970 = vdwg.mxu0
        %v971 = vadd.f32 %v878, %v967
        %v972 = vadd.f32 %v879, %v969
        %s973 = scalar_lea.vmem %s3, 56
        %v974 = vld [vmem:[%s973] sm:$0xff]
        %v975 = vmul.f32 %v974, 0.16666667
        %v976 = vmul.f32 %v975, %v328
        %v977 = vmul.f32 %v976, %v976
        %v978 = vsel %vm306, %v977, 0.0
        %979 = vadd.xlane.f32.xlu0 %v978
        %v980 = vpop.xlane.xlu0 %979
        %v981 = vadd.f32 %v888, %v980
        %s982 = scalar_lea.vmem %s271, 56
        %v983 = vld [vmem:[%s982] sm:$0xff]
        %v985 = vcombine.high %v983, %v983
        %v987 = vsel %vm306, %v976, 0
        %v989 = vsel %vm352, %v983, 0
        %v991 = vsel %vm352, %v985, 0
        %993 = vmatprep.subr.mxu0 0.0
        %994 = vmatpush1.msra.mxu0 0.0
        %995 = vmatprep.subr.mxu0 0.0
        %996 = vmatpush1.msra.mxu0 0.0
        %997 = vmatprep.subr.mxu0 0.0
        %998 = vmatpush1.msra.mxu0 0.0
        %999 = vmatprep.subr.mxu0 0.0
        %1000 = vmatpush1.msra.mxu0 0.0
        %1001 = vmatprep.subr.mxu0 0.0
        %1002 = vmatpush1.msra.mxu0 0.0
        %1003 = vmatprep.subr.mxu0 0.0
        %1004 = vmatpush1.msra.mxu0 0.0
        %1005 = vmatprep.subr.mxu0 0.0
        %1006 = vmatpush1.msra.mxu0 0.0
        %1007 = vmatprep.subr.mxu0 0.0
        %1008 = vmatpush1.msra.mxu0 0.0
        %1009 = vmatprep.subr.mxu0 0.0
        %1010 = vmatpush1.msra.mxu0 0.0
        %1011 = vmatprep.subr.mxu0 0.0
        %1012 = vmatpush1.msra.mxu0 0.0
        %1013 = vmatprep.subr.mxu0 0.0
        %1014 = vmatpush1.msra.mxu0 0.0
        %1015 = vmatprep.subr.mxu0 0.0
        %1016 = vmatpush1.msra.mxu0 0.0
        %1017 = vmatprep.subr.mxu0 0.0
        %1018 = vmatpush1.msra.mxu0 0.0
        %1019 = vmatprep.subr.mxu0 0.0
        %1020 = vmatpush1.msra.mxu0 0.0
        %1021 = vmatprep.subr.mxu0 0.0
        %1022 = vmatpush1.msra.mxu0 0.0
        %1023 = vmatprep.subr.mxu0 %v991
        %1024 = vmatpush1.msra.mxu0 %v989
        %1025 = vmatprep.subr.mxu0 0.0
        %1026 = vmatpush2.msra.mxu0 0.0
        %1027 = vmatprep.subr.mxu0 0.0
        %1028 = vmatpush2.msra.mxu0 0.0
        %1029 = vmatprep.subr.mxu0 0.0
        %1030 = vmatpush2.msra.mxu0 0.0
        %1031 = vmatprep.subr.mxu0 0.0
        %1032 = vmatpush2.msra.mxu0 0.0
        %1033 = vmatprep.subr.mxu0 0.0
        %1034 = vmatpush2.msra.mxu0 0.0
        %1035 = vmatprep.subr.mxu0 0.0
        %1036 = vmatpush2.msra.mxu0 0.0
        %1037 = vmatprep.subr.mxu0 0.0
        %1038 = vmatpush2.msra.mxu0 0.0
        %1039 = vmatprep.subr.mxu0 0.0
        %1040 = vmatpush2.msra.mxu0 0.0
        %1041 = vmatprep.subr.mxu0 0.0
        %1042 = vmatpush2.msra.mxu0 0.0
        %1043 = vmatprep.subr.mxu0 0.0
        %1044 = vmatpush2.msra.mxu0 0.0
        %1045 = vmatprep.subr.mxu0 0.0
        %1046 = vmatpush2.msra.mxu0 0.0
        %1047 = vmatprep.subr.mxu0 0.0
        %1048 = vmatpush2.msra.mxu0 0.0
        %1049 = vmatprep.subr.mxu0 0.0
        %1050 = vmatpush2.msra.mxu0 0.0
        %1051 = vmatprep.subr.mxu0 0.0
        %1052 = vmatpush2.msra.mxu0 0.0
        %1053 = vmatprep.subr.mxu0 0.0
        %1054 = vmatpush2.msra.mxu0 0.0
        %1055 = vmatprep.subr.mxu0 0.0
        %1056 = vmatpush2.msra.mxu0 0.0
        %1057 = vmatprep.mubr.f32.mxu0 0.0
        %1058 = vmatmul.mubr.f32.gmra.mxu0 %v987
        %v1059 = vpop.f32.mrf.mxu0
        %v1060 = vadd.f32 0.0, %v1059
        %v1061 = vpop.f32.mrf.mxu0
        %v1062 = vadd.f32 0.0, %v1061
        %1063 = vdwg.mxu0
        %v1064 = vadd.f32 %v971, %v1060
        %v1065 = vadd.f32 %v972, %v1062
        %s1066 = scalar_lea.vmem %s3, 64
        %v1067 = vld [vmem:[%s1066] sm:$0xff]
        %v1068 = vmul.f32 %v1067, 0.16666667
        %v1069 = vmul.f32 %v1068, %v328
        %v1070 = vmul.f32 %v1069, %v1069
        %v1071 = vsel %vm306, %v1070, 0.0
        %1072 = vadd.xlane.f32.xlu0 %v1071
        %v1073 = vpop.xlane.xlu0 %1072
        %v1074 = vadd.f32 %v981, %v1073
        %s1075 = scalar_lea.vmem %s271, 64
        %v1076 = vld [vmem:[%s1075] sm:$0xff]
        %v1078 = vcombine.high %v1076, %v1076
        %v1080 = vsel %vm306, %v1069, 0
        %v1082 = vsel %vm352, %v1076, 0
        %v1084 = vsel %vm352, %v1078, 0
        %1086 = vmatprep.subr.mxu0 0.0
        %1087 = vmatpush1.msra.mxu0 0.0
        %1088 = vmatprep.subr.mxu0 0.0
        %1089 = vmatpush1.msra.mxu0 0.0
        %1090 = vmatprep.subr.mxu0 0.0
        %1091 = vmatpush1.msra.mxu0 0.0
        %1092 = vmatprep.subr.mxu0 0.0
        %1093 = vmatpush1.msra.mxu0 0.0
        %1094 = vmatprep.subr.mxu0 0.0
        %1095 = vmatpush1.msra.mxu0 0.0
        %1096 = vmatprep.subr.mxu0 0.0
        %1097 = vmatpush1.msra.mxu0 0.0
        %1098 = vmatprep.subr.mxu0 0.0
        %1099 = vmatpush1.msra.mxu0 0.0
        %1100 = vmatprep.subr.mxu0 0.0
        %1101 = vmatpush1.msra.mxu0 0.0
        %1102 = vmatprep.subr.mxu0 0.0
        %1103 = vmatpush1.msra.mxu0 0.0
        %1104 = vmatprep.subr.mxu0 0.0
        %1105 = vmatpush1.msra.mxu0 0.0
        %1106 = vmatprep.subr.mxu0 0.0
        %1107 = vmatpush1.msra.mxu0 0.0
        %1108 = vmatprep.subr.mxu0 0.0
        %1109 = vmatpush1.msra.mxu0 0.0
        %1110 = vmatprep.subr.mxu0 0.0
        %1111 = vmatpush1.msra.mxu0 0.0
        %1112 = vmatprep.subr.mxu0 0.0
        %1113 = vmatpush1.msra.mxu0 0.0
        %1114 = vmatprep.subr.mxu0 0.0
        %1115 = vmatpush1.msra.mxu0 0.0
        %1116 = vmatprep.subr.mxu0 %v1084
        %1117 = vmatpush1.msra.mxu0 %v1082
        %1118 = vmatprep.subr.mxu0 0.0
        %1119 = vmatpush2.msra.mxu0 0.0
        %1120 = vmatprep.subr.mxu0 0.0
        %1121 = vmatpush2.msra.mxu0 0.0
        %1122 = vmatprep.subr.mxu0 0.0
        %1123 = vmatpush2.msra.mxu0 0.0
        %1124 = vmatprep.subr.mxu0 0.0
        %1125 = vmatpush2.msra.mxu0 0.0
        %1126 = vmatprep.subr.mxu0 0.0
        %1127 = vmatpush2.msra.mxu0 0.0
        %1128 = vmatprep.subr.mxu0 0.0
        %1129 = vmatpush2.msra.mxu0 0.0
        %1130 = vmatprep.subr.mxu0 0.0
        %1131 = vmatpush2.msra.mxu0 0.0
        %1132 = vmatprep.subr.mxu0 0.0
        %1133 = vmatpush2.msra.mxu0 0.0
        %1134 = vmatprep.subr.mxu0 0.0
        %1135 = vmatpush2.msra.mxu0 0.0
        %1136 = vmatprep.subr.mxu0 0.0
        %1137 = vmatpush2.msra.mxu0 0.0
        %1138 = vmatprep.subr.mxu0 0.0
        %1139 = vmatpush2.msra.mxu0 0.0
        %1140 = vmatprep.subr.mxu0 0.0
        %1141 = vmatpush2.msra.mxu0 0.0
        %1142 = vmatprep.subr.mxu0 0.0
        %1143 = vmatpush2.msra.mxu0 0.0
        %1144 = vmatprep.subr.mxu0 0.0
        %1145 = vmatpush2.msra.mxu0 0.0
        %1146 = vmatprep.subr.mxu0 0.0
        %1147 = vmatpush2.msra.mxu0 0.0
        %1148 = vmatprep.subr.mxu0 0.0
        %1149 = vmatpush2.msra.mxu0 0.0
        %1150 = vmatprep.mubr.f32.mxu0 0.0
        %1151 = vmatmul.mubr.f32.gmra.mxu0 %v1080
        %v1152 = vpop.f32.mrf.mxu0
        %v1153 = vadd.f32 0.0, %v1152
        %v1154 = vpop.f32.mrf.mxu0
        %v1155 = vadd.f32 0.0, %v1154
        %1156 = vdwg.mxu0
        %v1157 = vadd.f32 %v1064, %v1153
        %v1158 = vadd.f32 %v1065, %v1155
        %v1159 = vadd.f32 %v1074, 1e-08
        %v1160 = vrsqrt.pop %v1159
        %v1161 = vmul.f32 %v1157, %v1160
        %v1162 = vmul.f32 %v1158, %v1160
        %1163 = vst [vmem:[%s257] sm:$0xff] %v1161
        %1164 = vst [vmem:[%s257 + $0x8] sm:$0xff] %v1162
        %s1165 = sand.u32 %s158, 1
        %s1166 = scalar_lea.sflag [#allocation3], %s1165
        %s1167 = sand.u32 %s158, 1
        %s1168 = smul.addr %s1167, 16
        %s1169 = scalar_lea.vmem [#allocation2], %s1168
        // Predicated region
        $region41: #{tpu_custom_call.1} parent=39 // pred_check
          %p1170 = pneg %p168
        $region42: #{tpu_custom_call.1} parent=39 // pred_check_branch
          %1172 = sbr.rel (%p1170) target = $region44
        $region43: #{tpu_custom_call.1} parent=39 // pred_region
          %s1173 = smul.u32 2, %s24
          %s1175 = ssub.s32 256, 256
          %1176 = vsyncadd %s1166, %s1175
          %s1177 = smul.addr %s23, 2
          %s1178 = sadd.s32 %s1173, %s1177
          %s1179 = smul.addr %s1178, 128
          %s1180 = scalar_lea.hbm %s5, %s1179
          %s1182 = sshll.u32 %s1169, 4
          %s1183 = int_to_ptr.vmem [resolvable:$true] %s1182
          %1185 = dma.vmem_to_hbm [thread:$0]  %s1183, 256, %s1180, %s1166
        $region44: #{tpu_custom_call.1} parent=39 // pred_fallthru
          _
      $region40: #{tpu_custom_call.1} parent=5 // pred_fallthru
        _
      %p1186 = scmp.le.s32.totalorder 2, %s14
      // Predicated region
      $region45: #{tpu_custom_call.1} parent=5 // pred_check
        %p1187 = pneg %p1186
      $region46: #{tpu_custom_call.1} parent=5 // pred_check_branch
        %1189 = sbr.rel (%p1187) target = $region48
      $region47: #{tpu_custom_call.1} parent=5 // pred_region
        %s1190 = ssub.s32 %s14, 2
        // Predicated region
        $region49: #{tpu_custom_call.1} parent=47 // pred_check
          %p1191 = pneg %p174
        $region50: #{tpu_custom_call.1} parent=47 // pred_check_branch
          %1193 = sbr.rel (%p1191) target = $region52
        $region51: #{tpu_custom_call.1} parent=47 // pred_region
          %s1194 = sand.u32 %s159, 1
          %s1195 = scalar_lea.sflag [#allocation3], %s1194
          %s1196 = sand.u32 %s159, 1
          %s1197 = smul.addr %s1196, 16
          %s1198 = scalar_lea.vmem [#allocation2], %s1197
          %1199 = dma.done %s1195, 256
        $region52: #{tpu_custom_call.1} parent=47 // pred_fallthru
          _
      $region48: #{tpu_custom_call.1} parent=5 // pred_fallthru
        _
    $region6: #{tpu_custom_call.1} parent=1 // loop_footer
      %s18 = sadd.s32 1, %s14
    $region7: #{tpu_custom_call.1} parent=1 // loop_footer_branch
      %13 = sbr.rel target = $region3
    $region8: #{tpu_custom_call.1} parent=1 // loop_exit
      _
    %1200 = vsyncpa [#allocation3], 1
    %s1201 = scalar_lea.sflag [#allocation3], 1
    %1202 = vsyncpa %s1201, 1

</llo_original>
